<compile_context>
chip_gen: v7x
topology: tpu7x:2x2x1
jax: 0.10.0
libtpu: 0.0.40
codegen_flags: <defaults>
</compile_context>

<pallas_src>
import functools

import jax
import jax.numpy as jnp
from jax.experimental import pallas as pl
from jax.experimental.pallas import tpu as pltpu

# ---------------- ESM-1b alphabet constants ----------------
ALPHABET_SIZE = 33
CLS_IDX, PAD_IDX, EOS_IDX, MASK_IDX = 0, 1, 2, 32

# ---------------- small synthetic model config ----------------
NUM_LAYERS = 2
EMBED_DIM = 64
ATTN_HEADS = 4
HEAD_DIM = EMBED_DIM // ATTN_HEADS
FFN_DIM = 4 * EMBED_DIM
LN_EPS = 1e-5
TOKEN_DROPOUT = True
NEG_INF = -1e30

ACT_DTYPE = jnp.bfloat16   # stored activations / matmul operands (accum is f32)
ROW_TILE = 256             # target row tile for dense kernels (sweep per chip)
LANE = 128


def _round_up(x, m):
    return ((x + m - 1) // m) * m


def _pick_tile_and_pad(x):
    """Pad rows of a 2-D activation up to a row-tile multiple.

    Returns (x_padded, original_M, tm).  tm is a multiple of 16 (sublane-dense
    for bf16) and at most ROW_TILE, so small shapes are not blown up while
    large shapes get big MXU-saturating tiles.
    """
    M = x.shape[0]
    tm = min(ROW_TILE, _round_up(M, 16))
    Mp = _round_up(M, tm)
    if Mp != M:
        x = jnp.pad(x, ((0, Mp - M), (0, 0)))
    return x, M, tm


def _pad_rows_to(x, Mp):
    M = x.shape[0]
    if Mp != M:
        x = jnp.pad(x, ((0, Mp - M), (0, 0)))
    return x


# ================= in-kernel math helpers =================

def _erf_approx(x):
    # Abramowitz & Stegun 7.1.26 rational approximation, |error| < 1.5e-7.
    # Uses only VPU ops + one EUP exp (no dependency on an erf lowering rule).
    a1, a2, a3, a4, a5 = 0.254829592, -0.284496736, 1.421413741, -1.453152027, 1.061405429
    p = 0.3275911
    sgn = jnp.where(x >= 0.0, 1.0, -1.0)
    ax = jnp.abs(x)
    t = 1.0 / (1.0 + p * ax)
    poly = ((((a5 * t + a4) * t + a3) * t + a2) * t + a1) * t
    return sgn * (1.0 - poly * jnp.exp(-ax * ax))


def _gelu(y):
    # exact (erf) GELU as in ESM's gelu(), via the polynomial erf above
    return y * 0.5 * (1.0 + _erf_approx(y * 0.7071067811865476))


# ================= Pallas kernels =================

def _linear_kernel(x_ref, w_ref, b_ref, o_ref, *, activation):
    y = jnp.dot(x_ref[...], w_ref[...], preferred_element_type=jnp.float32)
    y = y + b_ref[...]
    if activation == "gelu":
        y = _gelu(y)
    o_ref[...] = y.astype(o_ref.dtype)


def _linear_res_kernel(x_ref, w_ref, b_ref, res_ref, o_ref, *, activation):
    y = jnp.dot(x_ref[...], w_ref[...], preferred_element_type=jnp.float32)
    y = y + b_ref[...]
    if activation == "gelu":
        y = _gelu(y)
    y = y + res_ref[...].astype(jnp.float32)      # fused residual add
    o_ref[...] = y.astype(o_ref.dtype)


def linear_pallas(x, w, b, activation=None, residual=None, out_dtype=ACT_DTYPE):
    """x: (M, K) @ w: (K, N) + b: (N,) -> (M, N).

    Optional fused GELU and fused residual add (residual: (M, N)).
    M is padded to a row-tile multiple and sliced back (no divisibility assert).
    """
    xp, M, tm = _pick_tile_and_pad(x)
    Mp, K = xp.shape
    N = w.shape[1]

    if residual is None:
        kernel = functools.partial(_linear_kernel, activation=activation)
        in_specs = [
            pl.BlockSpec((tm, K), lambda i: (i, 0)),
            pl.BlockSpec((K, N), lambda i: (0, 0)),
            pl.BlockSpec((1, N), lambda i: (0, 0)),
        ]
        args = (xp, w, b.reshape(1, N))
    else:
        kernel = functools.partial(_linear_res_kernel, activation=activation)
        resp = _pad_rows_to(residual, Mp)
        in_specs = [
            pl.BlockSpec((tm, K), lambda i: (i, 0)),
            pl.BlockSpec((K, N), lambda i: (0, 0)),
            pl.BlockSpec((1, N), lambda i: (0, 0)),
            pl.BlockSpec((tm, N), lambda i: (i, 0)),
        ]
        args = (xp, w, b.reshape(1, N), resp)

    yp = pl.pallas_call(
        kernel,
        out_shape=jax.ShapeDtypeStruct((Mp, N), out_dtype),
        grid=(Mp // tm,),
        in_specs=in_specs,
        out_specs=pl.BlockSpec((tm, N), lambda i: (i, 0)),
        compiler_params=pltpu.CompilerParams(dimension_semantics=("parallel",)),
    )(*args)
    return yp[:M]


def _ln_linear_kernel(x_ref, g_ref, bln_ref, w_ref, b_ref, o_ref, *, eps, activation):
    # fused LayerNorm -> Linear (+ optional GELU); LN math in f32, matmul in bf16.
    x = x_ref[...].astype(jnp.float32)
    mu = jnp.mean(x, axis=-1, keepdims=True)
    d = x - mu
    var = jnp.mean(d * d, axis=-1, keepdims=True)
    h = (d * jax.lax.rsqrt(var + eps) * g_ref[...] + bln_ref[...]).astype(w_ref.dtype)
    y = jnp.dot(h, w_ref[...], preferred_element_type=jnp.float32) + b_ref[...]
    if activation == "gelu":
        y = _gelu(y)
    o_ref[...] = y.astype(o_ref.dtype)


def ln_linear_pallas(x, g, bln, w, b, activation=None, out_dtype=ACT_DTYPE):
    """Fused LayerNorm (over last dim) followed by x_norm @ w + b."""
    xp, M, tm = _pick_tile_and_pad(x)
    Mp, K = xp.shape
    N = w.shape[1]
    yp = pl.pallas_call(
        functools.partial(_ln_linear_kernel, eps=LN_EPS, activation=activation),
        out_shape=jax.ShapeDtypeStruct((Mp, N), out_dtype),
        grid=(Mp // tm,),
        in_specs=[
            pl.BlockSpec((tm, K), lambda i: (i, 0)),
            pl.BlockSpec((1, K), lambda i: (0, 0)),
            pl.BlockSpec((1, K), lambda i: (0, 0)),
            pl.BlockSpec((K, N), lambda i: (0, 0)),
            pl.BlockSpec((1, N), lambda i: (0, 0)),
        ],
        out_specs=pl.BlockSpec((tm, N), lambda i: (i, 0)),
        compiler_params=pltpu.CompilerParams(dimension_semantics=("parallel",)),
    )(xp, g.reshape(1, K), bln.reshape(1, K), w, b.reshape(1, N))
    return yp[:M]


def _layernorm_kernel(x_ref, g_ref, b_ref, o_ref, *, eps):
    x = x_ref[...].astype(jnp.float32)
    mu = jnp.mean(x, axis=-1, keepdims=True)
    d = x - mu
    var = jnp.mean(d * d, axis=-1, keepdims=True)
    y = d * jax.lax.rsqrt(var + eps) * g_ref[...] + b_ref[...]
    o_ref[...] = y.astype(o_ref.dtype)


def layernorm_pallas(x, g, b, out_dtype=ACT_DTYPE):
    """Row-wise LayerNorm over the last dim. x: (M, D)."""
    xp, M, tm = _pick_tile_and_pad(x)
    Mp, D = xp.shape
    yp = pl.pallas_call(
        functools.partial(_layernorm_kernel, eps=LN_EPS),
        out_shape=jax.ShapeDtypeStruct((Mp, D), out_dtype),
        grid=(Mp // tm,),
        in_specs=[
            pl.BlockSpec((tm, D), lambda i: (i, 0)),
            pl.BlockSpec((1, D), lambda i: (0, 0)),
            pl.BlockSpec((1, D), lambda i: (0, 0)),
        ],
        out_specs=pl.BlockSpec((tm, D), lambda i: (i, 0)),
        compiler_params=pltpu.CompilerParams(dimension_semantics=("parallel",)),
    )(xp, g.reshape(1, D), b.reshape(1, D))
    return yp[:M]


def _attn_kernel(q_ref, k_ref, v_ref, bias_ref, o_ref):
    # One batch element, ALL heads per grid step.
    q = q_ref[0]                               # (H, S, Dh) bf16 (scaled + rotary)
    k = k_ref[0]                               # (H, S, Dh)
    v = v_ref[0]                               # (H, S, Dh)
    s = jnp.einsum("hqd,hkd->hqk", q, k, preferred_element_type=jnp.float32)
    s = s + bias_ref[0]                        # (1, S) key-padding bias broadcast
    s = s - jnp.max(s, axis=-1, keepdims=True)
    p = jnp.exp(s)
    l = jnp.sum(p, axis=-1, keepdims=True)     # (H, S, 1)
    o = jnp.einsum("hqk,hkd->hqd", p.astype(v.dtype), v,
                   preferred_element_type=jnp.float32)
    # deferred normalization: one scale of the PV output, reciprocal on the EUP
    o_ref[0] = (o * pl.reciprocal(l, approx=True)).astype(o_ref.dtype)


def attention_pallas(q, k, v, bias):
    """q, k, v: (B, H, S, Dh); bias: (B, 1, S) additive key-padding bias."""
    B, H, S, Dh = q.shape
    return pl.pallas_call(
        _attn_kernel,
        out_shape=jax.ShapeDtypeStruct((B, H, S, Dh), ACT_DTYPE),
        grid=(B,),
        in_specs=[
            pl.BlockSpec((1, H, S, Dh), lambda b: (b, 0, 0, 0)),
            pl.BlockSpec((1, H, S, Dh), lambda b: (b, 0, 0, 0)),
            pl.BlockSpec((1, H, S, Dh), lambda b: (b, 0, 0, 0)),
            pl.BlockSpec((1, 1, S), lambda b: (b, 0, 0)),   # shared across heads
        ],
        out_specs=pl.BlockSpec((1, H, S, Dh), lambda b: (b, 0, 0, 0)),
        compiler_params=pltpu.CompilerParams(dimension_semantics=("parallel",)),
    )(q, k, v, bias)


# ================= plain-JAX glue =================

def _rotate_half(x):
    x1, x2 = jnp.split(x, 2, axis=-1)
    return jnp.concatenate([-x2, x1], axis=-1)


def _rope_tables(seq_len, dim):
    inv_freq = 1.0 / (10000.0 ** (jnp.arange(0, dim, 2, dtype=jnp.float32) / dim))
    t = jnp.arange(seq_len, dtype=jnp.float32)
    freqs = jnp.einsum("i,j->ij", t, inv_freq)               # (S, dim/2)
    emb = jnp.concatenate([freqs, freqs], axis=-1)           # (S, dim)
    return jnp.cos(emb), jnp.sin(emb)


def _apply_rope(x, cos, sin):
    # x: (B, H, S, Dh); cos/sin: (S, Dh); rotation done in f32
    xf = x.astype(jnp.float32)
    return (xf * cos[None, None] + _rotate_half(xf) * sin[None, None]).astype(x.dtype)


def transformer_layer(x2d, lp, key_bias, cos, sin, B, S):
    """One ESM TransformerLayer (pre-LN, rotary MHA, GELU FFN). x2d: (B*S, D)."""
    D, H, Dh = EMBED_DIM, ATTN_HEADS, HEAD_DIM

    # --- self-attention block: fused LN -> QKV projection (q already scaled) ---
    qkv = ln_linear_pallas(x2d, lp["ln1_g"], lp["ln1_b"], lp["qkv_w"], lp["qkv_b"])
    qkv = qkv.reshape(B, S, 3, H, Dh).transpose(2, 0, 3, 1, 4)   # (3, B, H, S, Dh)
    q = _apply_rope(qkv[0], cos, sin)
    k = _apply_rope(qkv[1], cos, sin)
    v = qkv[2]
    o = attention_pallas(q, k, v, key_bias)                      # (B, H, S, Dh)
    o = o.transpose(0, 2, 1, 3).reshape(B * S, D)
    # output projection with the residual add fused into the kernel
    x2d = linear_pallas(o, lp["o_w"], lp["o_b"], residual=x2d)

    # --- feed-forward block: fused LN -> fc1 (+GELU), then fc2 (+residual) ---
    h = ln_linear_pallas(x2d, lp["ln2_g"], lp["ln2_b"],
                         lp["fc1_w"], lp["fc1_b"], activation="gelu")
    x2d = linear_pallas(h, lp["fc2_w"], lp["fc2_b"], residual=x2d)
    return x2d


def esm2_forward(params, tokens, repr_layers=()):
    """Mirrors ESM2.forward with repr_layers=[], need_head_weights=False."""
    assert tokens.ndim == 2
    B, S = tokens.shape
    D = EMBED_DIM
    repr_layers = set(repr_layers)

    padding_mask = (tokens == PAD_IDX)                        # (B, S) bool
    x = params["embed"][tokens].astype(jnp.float32)           # gather (glue)

    if TOKEN_DROPOUT:
        mask_flag = (tokens == MASK_IDX)
        mask_ratio_train = 0.15 * 0.8
        src_lengths = jnp.sum(~padding_mask, axis=-1).astype(jnp.float32)
        mask_ratio_observed = jnp.sum(mask_flag, axis=-1).astype(jnp.float32) / src_lengths
        scale = (1.0 - mask_ratio_train) / (1.0 - mask_ratio_observed)   # (B,)
        # elementwise scaling fuses with the gather under XLA (no separate kernel)
        x = x * (1.0 - mask_flag[..., None].astype(jnp.float32)) * scale[:, None, None]
    x = x * (1.0 - padding_mask[..., None].astype(jnp.float32))
    x = x.astype(ACT_DTYPE)

    hidden_representations = {}
    if 0 in repr_layers:
        hidden_representations[0] = x

    # If no padding exists the bias is all zeros -> identical to the
    # `padding_mask = None` branch of the reference.
    key_bias = jnp.where(padding_mask, NEG_INF, 0.0).astype(jnp.float32)[:, None, :]  # (B,1,S)
    cos, sin = _rope_tables(S, HEAD_DIM)

    x2d = x.reshape(B * S, D)
    for layer_idx, lp in enumerate(params["layers"]):
        x2d = transformer_layer(x2d, lp, key_bias, cos, sin, B, S)
        if layer_idx + 1 in repr_layers:
            hidden_representations[layer_idx + 1] = x2d.reshape(B, S, D)

    # Final LayerNorm + RobertaLMHead (dense -> gelu -> layernorm -> tied proj).
    if NUM_LAYERS in repr_layers:
        xn = layernorm_pallas(x2d, params["emb_ln_g"], params["emb_ln_b"])
        hidden_representations[NUM_LAYERS] = xn.reshape(B, S, D)
        h = linear_pallas(xn, params["lm_dense_w"], params["lm_dense_b"],
                          activation="gelu")
    else:
        # fuse emb_layer_norm_after into the LM-head dense + GELU kernel
        h = ln_linear_pallas(x2d, params["emb_ln_g"], params["emb_ln_b"],
                             params["lm_dense_w"], params["lm_dense_b"],
                             activation="gelu")

    # LM LayerNorm fused into the (lane-padded) tied projection.
    logits_p = ln_linear_pallas(h, params["lm_ln_g"], params["lm_ln_b"],
                                params["lm_proj_w"], params["lm_proj_b"],
                                out_dtype=jnp.float32)
    logits = logits_p[:, :ALPHABET_SIZE].reshape(B, S, ALPHABET_SIZE)

    return {"logits": logits, "representations": hidden_representations}


# ================= parameter init + prep =================

def init_params(key):
    """Raw (PyTorch-layout) parameters; all weights (in_features, out_features)."""
    def nrm(k, shape, scale=0.02):
        return scale * jax.random.normal(k, shape, jnp.float32)

    keys = iter(jax.random.split(key, 8 + 8 * NUM_LAYERS))
    D, F, V = EMBED_DIM, FFN_DIM, ALPHABET_SIZE

    embed = nrm(next(keys), (V, D))
    embed = embed.at[PAD_IDX].set(0.0)   # nn.Embedding padding_idx row is zero

    layers = []
    for _ in range(NUM_LAYERS):
        layers.append({
            "ln1_g": jnp.ones((D,), jnp.float32), "ln1_b": jnp.zeros((D,), jnp.float32),
            "q_w": nrm(next(keys), (D, D)), "q_b": jnp.zeros((D,), jnp.float32),
            "k_w": nrm(next(keys), (D, D)), "k_b": jnp.zeros((D,), jnp.float32),
            "v_w": nrm(next(keys), (D, D)), "v_b": jnp.zeros((D,), jnp.float32),
            "o_w": nrm(next(keys), (D, D)), "o_b": jnp.zeros((D,), jnp.float32),
            "ln2_g": jnp.ones((D,), jnp.float32), "ln2_b": jnp.zeros((D,), jnp.float32),
            "fc1_w": nrm(next(keys), (D, F)), "fc1_b": jnp.zeros((F,), jnp.float32),
            "fc2_w": nrm(next(keys), (F, D)), "fc2_b": jnp.zeros((D,), jnp.float32),
        })

    return {
        "embed": embed,
        "layers": layers,
        "emb_ln_g": jnp.ones((D,), jnp.float32),
        "emb_ln_b": jnp.zeros((D,), jnp.float32),
        "lm_dense_w": nrm(next(keys), (D, D)),
        "lm_dense_b": jnp.zeros((D,), jnp.float32),
        "lm_ln_g": jnp.ones((D,), jnp.float32),
        "lm_ln_b": jnp.zeros((D,), jnp.float32),
        "lm_bias": jnp.zeros((V,), jnp.float32),
    }


def prepare_params(raw):
    """One-time fold/fuse of raw weights into the kernel-friendly layout:
    QKV concat (with 1/sqrt(Dh) folded into Q), bf16 matmul weights,
    pre-transposed + lane-padded tied LM projection."""
    D, Dh, V = EMBED_DIM, HEAD_DIM, ALPHABET_SIZE
    scaling = Dh ** -0.5
    mm = ACT_DTYPE

    layers = []
    for lp in raw["layers"]:
        qkv_w = jnp.concatenate([lp["q_w"] * scaling, lp["k_w"], lp["v_w"]], axis=1)
        qkv_b = jnp.concatenate([lp["q_b"] * scaling, lp["k_b"], lp["v_b"]], axis=0)
        layers.append({
            "ln1_g": lp["ln1_g"], "ln1_b": lp["ln1_b"],
            "qkv_w": qkv_w.astype(mm), "qkv_b": qkv_b.astype(jnp.float32),
            "o_w": lp["o_w"].astype(mm), "o_b": lp["o_b"],
            "ln2_g": lp["ln2_g"], "ln2_b": lp["ln2_b"],
            "fc1_w": lp["fc1_w"].astype(mm), "fc1_b": lp["fc1_b"],
            "fc2_w": lp["fc2_w"].astype(mm), "fc2_b": lp["fc2_b"],
        })

    # tied LM head: pre-transpose embedding once, pad output dim 33 -> 128 lanes
    Vp = _round_up(V, LANE)
    lm_proj_w = jnp.zeros((D, Vp), jnp.float32).at[:, :V].set(raw["embed"].T)
    lm_proj_b = jnp.zeros((Vp,), jnp.float32).at[:V].set(raw["lm_bias"])

    return {
        "embed": raw["embed"],
        "layers": layers,
        "emb_ln_g": raw["emb_ln_g"], "emb_ln_b": raw["emb_ln_b"],
        "lm_dense_w": raw["lm_dense_w"].astype(mm), "lm_dense_b": raw["lm_dense_b"],
        "lm_ln_g": raw["lm_ln_g"], "lm_ln_b": raw["lm_ln_b"],
        "lm_proj_w": lm_proj_w.astype(mm), "lm_proj_b": lm_proj_b,
    }


if __name__ == "__main__":
    key = jax.random.PRNGKey(0)
    params = prepare_params(init_params(key))

    # tokens: <cls>=0, amino acids in [4, 23], <mask>=32, <eos>=2, <pad>=1
    tokens = jnp.array(
        [[CLS_IDX, 5, 6, MASK_IDX, 7, 8, EOS_IDX, PAD_IDX],
         [CLS_IDX, 9, 10, 11, 12, 13, 14, EOS_IDX]],
        dtype=jnp.int32,
    )

    out = jax.jit(esm2_forward)(params, tokens)
    logits = jax.block_until_ready(out["logits"])
    assert logits.shape == (2, 8, ALPHABET_SIZE)
    assert bool(jnp.all(jnp.isfinite(logits)))
    print("KERNEL_OK")
</pallas_src>

<mosaic_0001>
module attributes {stable_mosaic.version = 11 : i64} {
  func.func @_ln_linear_kernel(%arg0: i32, %arg1: memref<16x64xbf16, #tpu.memory_space<vmem>>, %arg2: memref<1x64xf32, #tpu.memory_space<vmem>>, %arg3: memref<1x64xf32, #tpu.memory_space<vmem>>, %arg4: memref<64x192xbf16, #tpu.memory_space<vmem>>, %arg5: memref<1x192xf32, #tpu.memory_space<vmem>>, %arg6: memref<16x192xbf16, #tpu.memory_space<vmem>>) attributes {dimension_semantics = [#tpu.dimension_semantics<parallel>], iteration_bounds = array<i64: 1>, scalar_prefetch = 0 : i64, scratch_operands = 0 : i64, tpu.core_type = #tpu.core_type<tc>, window_params = [{transform_indices = @transform_0, window_bounds = array<i64: 16, 64>}, {pipeline_mode = #tpu.pipeline_mode<synchronous>, transform_indices = @transform_1, window_bounds = array<i64: 1, 64>}, {pipeline_mode = #tpu.pipeline_mode<synchronous>, transform_indices = @transform_2, window_bounds = array<i64: 1, 64>}, {pipeline_mode = #tpu.pipeline_mode<synchronous>, transform_indices = @transform_3, window_bounds = array<i64: 64, 192>}, {pipeline_mode = #tpu.pipeline_mode<synchronous>, transform_indices = @transform_4, window_bounds = array<i64: 1, 192>}, {transform_indices = @transform_5, window_bounds = array<i64: 16, 192>}]} {
    %c0 = arith.constant 0 : index
    %c0_0 = arith.constant 0 : index
    %0 = vector.load %arg1[%c0, %c0_0] : memref<16x64xbf16, #tpu.memory_space<vmem>>, vector<16x64xbf16>
    %1 = arith.extf %0 : vector<16x64xbf16> to vector<16x64xf32>
    %cst = arith.constant dense<0.000000e+00> : vector<16xf32>
    %2 = vector.multi_reduction <add>, %1, %cst [1] : vector<16x64xf32> to vector<16xf32>
    %3 = vector.shape_cast %2 : vector<16xf32> to vector<16x1xf32>
    %cst_1 = arith.constant 6.400000e+01 : f32
    %4 = vector.broadcast %cst_1 : f32 to vector<16x1xf32>
    %5 = arith.divf %3, %4 : vector<16x1xf32>
    %6 = vector.broadcast %5 : vector<16x1xf32> to vector<16x64xf32>
    %7 = arith.subf %1, %6 : vector<16x64xf32>
    %8 = arith.mulf %7, %7 : vector<16x64xf32>
    %cst_2 = arith.constant dense<0.000000e+00> : vector<16xf32>
    %9 = vector.multi_reduction <add>, %8, %cst_2 [1] : vector<16x64xf32> to vector<16xf32>
    %10 = vector.shape_cast %9 : vector<16xf32> to vector<16x1xf32>
    %cst_3 = arith.constant 6.400000e+01 : f32
    %11 = vector.broadcast %cst_3 : f32 to vector<16x1xf32>
    %12 = arith.divf %10, %11 : vector<16x1xf32>
    %cst_4 = arith.constant 9.99999974E-6 : f32
    %13 = vector.broadcast %cst_4 : f32 to vector<16x1xf32>
    %14 = arith.addf %12, %13 : vector<16x1xf32>
    %15 = math.rsqrt %14 : vector<16x1xf32>
    %16 = vector.broadcast %15 : vector<16x1xf32> to vector<16x64xf32>
    %17 = arith.mulf %7, %16 : vector<16x64xf32>
    %c0_5 = arith.constant 0 : index
    %c0_6 = arith.constant 0 : index
    %18 = vector.load %arg2[%c0_5, %c0_6] : memref<1x64xf32, #tpu.memory_space<vmem>>, vector<1x64xf32>
    %19 = vector.broadcast %18 : vector<1x64xf32> to vector<16x64xf32>
    %20 = arith.mulf %17, %19 : vector<16x64xf32>
    %c0_7 = arith.constant 0 : index
    %c0_8 = arith.constant 0 : index
    %21 = vector.load %arg3[%c0_7, %c0_8] : memref<1x64xf32, #tpu.memory_space<vmem>>, vector<1x64xf32>
    %22 = vector.broadcast %21 : vector<1x64xf32> to vector<16x64xf32>
    %23 = arith.addf %20, %22 : vector<16x64xf32>
    %24 = arith.truncf %23 : vector<16x64xf32> to vector<16x64xbf16>
    %c0_9 = arith.constant 0 : index
    %c0_10 = arith.constant 0 : index
    %25 = vector.load %arg4[%c0_9, %c0_10] : memref<64x192xbf16, #tpu.memory_space<vmem>>, vector<64x192xbf16>
    %cst_11 = arith.constant dense<0.000000e+00> : vector<16x192xf32>
    %26 = tpu.matmul %24, %25, %cst_11 {dimension_numbers = #tpu.dot_dimension_numbers<[1], [0], [0], [1], [0, 0, 1, 1], [], []>} : vector<16x64xbf16>, vector<64x192xbf16>, vector<16x192xf32> -> vector<16x192xf32>
    %c0_12 = arith.constant 0 : index
    %c0_13 = arith.constant 0 : index
    %27 = vector.load %arg5[%c0_12, %c0_13] : memref<1x192xf32, #tpu.memory_space<vmem>>, vector<1x192xf32>
    %28 = vector.broadcast %27 : vector<1x192xf32> to vector<16x192xf32>
    %29 = arith.addf %26, %28 : vector<16x192xf32>
    %30 = arith.truncf %29 : vector<16x192xf32> to vector<16x192xbf16>
    %c0_14 = arith.constant 0 : index
    %c0_15 = arith.constant 0 : index
    %31 = vector.load %arg6[%c0_14, %c0_15] : memref<16x192xbf16, #tpu.memory_space<vmem>>, vector<16x192xbf16>
    tpu.vector_store %arg6[%c0_14, %c0_15], %30 {strides = array<i32>} : memref<16x192xbf16, #tpu.memory_space<vmem>>, vector<16x192xbf16>,
    return
  }
  func.func @transform_0(%arg0: i32) -> (i32, i32) {
    %c0_i32 = arith.constant 0 : i32
    %c0_i32_0 = arith.constant 0 : i32
    return %arg0, %c0_i32 : i32, i32
  }
  func.func @transform_1(%arg0: i32) -> (i32, i32) {
    %c0_i32 = arith.constant 0 : i32
    %c0_i32_0 = arith.constant 0 : i32
    %c0_i32_1 = arith.constant 0 : i32
    return %c0_i32, %c0_i32_0 : i32, i32
  }
  func.func @transform_2(%arg0: i32) -> (i32, i32) {
    %c0_i32 = arith.constant 0 : i32
    %c0_i32_0 = arith.constant 0 : i32
    %c0_i32_1 = arith.constant 0 : i32
    return %c0_i32, %c0_i32_0 : i32, i32
  }
  func.func @transform_3(%arg0: i32) -> (i32, i32) {
    %c0_i32 = arith.constant 0 : i32
    %c0_i32_0 = arith.constant 0 : i32
    %c0_i32_1 = arith.constant 0 : i32
    return %c0_i32, %c0_i32_0 : i32, i32
  }
  func.func @transform_4(%arg0: i32) -> (i32, i32) {
    %c0_i32 = arith.constant 0 : i32
    %c0_i32_0 = arith.constant 0 : i32
    %c0_i32_1 = arith.constant 0 : i32
    return %c0_i32, %c0_i32_0 : i32, i32
  }
  func.func @transform_5(%arg0: i32) -> (i32, i32) {
    %c0_i32 = arith.constant 0 : i32
    %c0_i32_0 = arith.constant 0 : i32
    return %arg0, %c0_i32 : i32, i32
  }
}

module attributes {stable_mosaic.version = 11 : i64} {
  func.func @_attn_kernel(%arg0: i32, %arg1: memref<1x4x8x16xbf16, #tpu.memory_space<vmem>>, %arg2: memref<1x4x8x16xbf16, #tpu.memory_space<vmem>>, %arg3: memref<1x4x8x16xbf16, #tpu.memory_space<vmem>>, %arg4: memref<1x1x8xf32, #tpu.memory_space<vmem>>, %arg5: memref<1x4x8x16xbf16, #tpu.memory_space<vmem>>) attributes {dimension_semantics = [#tpu.dimension_semantics<parallel>], iteration_bounds = array<i64: 2>, scalar_prefetch = 0 : i64, scratch_operands = 0 : i64, tpu.core_type = #tpu.core_type<tc>, window_params = [{transform_indices = @transform_0, window_bounds = array<i64: 1, 4, 8, 16>}, {transform_indices = @transform_1, window_bounds = array<i64: 1, 4, 8, 16>}, {transform_indices = @transform_2, window_bounds = array<i64: 1, 4, 8, 16>}, {transform_indices = @transform_3, window_bounds = array<i64: 1, 1, 8>}, {transform_indices = @transform_4, window_bounds = array<i64: 1, 4, 8, 16>}]} {
    %c0 = arith.constant 0 : index
    %c0_0 = arith.constant 0 : index
    %c0_1 = arith.constant 0 : index
    %c0_2 = arith.constant 0 : index
    %0 = vector.load %arg1[%c0, %c0_0, %c0_1, %c0_2] : memref<1x4x8x16xbf16, #tpu.memory_space<vmem>>, vector<1x4x8x16xbf16>
    %1 = vector.shape_cast %0 : vector<1x4x8x16xbf16> to vector<4x8x16xbf16>
    %c0_3 = arith.constant 0 : index
    %c0_4 = arith.constant 0 : index
    %c0_5 = arith.constant 0 : index
    %c0_6 = arith.constant 0 : index
    %2 = vector.load %arg2[%c0_3, %c0_4, %c0_5, %c0_6] : memref<1x4x8x16xbf16, #tpu.memory_space<vmem>>, vector<1x4x8x16xbf16>
    %3 = vector.shape_cast %2 : vector<1x4x8x16xbf16> to vector<4x8x16xbf16>
    %c0_7 = arith.constant 0 : index
    %c0_8 = arith.constant 0 : index
    %c0_9 = arith.constant 0 : index
    %c0_10 = arith.constant 0 : index
    %4 = vector.load %arg3[%c0_7, %c0_8, %c0_9, %c0_10] : memref<1x4x8x16xbf16, #tpu.memory_space<vmem>>, vector<1x4x8x16xbf16>
    %5 = vector.shape_cast %4 : vector<1x4x8x16xbf16> to vector<4x8x16xbf16>
    "tpu.trace_start"() <{level = 10 : i32, message = "hqd,hkd->hqk"}> : () -> ()
    %cst = arith.constant dense<0.000000e+00> : vector<4x8x8xf32>
    %6 = tpu.matmul %1, %3, %cst {dimension_numbers = #tpu.dot_dimension_numbers<[2], [2], [1], [1], [0, 0, 0, 1, 1, 1], [0], [0]>} : vector<4x8x16xbf16>, vector<4x8x16xbf16>, vector<4x8x8xf32> -> vector<4x8x8xf32>
    "tpu.trace_stop"() : () -> ()
    %c0_11 = arith.constant 0 : index
    %c0_12 = arith.constant 0 : index
    %c0_13 = arith.constant 0 : index
    %7 = vector.load %arg4[%c0_11, %c0_12, %c0_13] : memref<1x1x8xf32, #tpu.memory_space<vmem>>, vector<1x1x8xf32>
    %8 = vector.shape_cast %7 : vector<1x1x8xf32> to vector<1x8xf32>
    %9 = vector.shape_cast %8 : vector<1x8xf32> to vector<1x1x8xf32>
    %10 = vector.broadcast %9 : vector<1x1x8xf32> to vector<4x8x8xf32>
    %11 = arith.addf %6, %10 : vector<4x8x8xf32>
    %cst_14 = arith.constant dense<0xFF800000> : vector<4x8xf32>
    %12 = vector.multi_reduction <maximumf>, %11, %cst_14 [2] : vector<4x8x8xf32> to vector<4x8xf32>
    %13 = vector.shape_cast %12 : vector<4x8xf32> to vector<4x8x1xf32>
    %14 = vector.broadcast %13 : vector<4x8x1xf32> to vector<4x8x8xf32>
    %15 = arith.subf %11, %14 : vector<4x8x8xf32>
    %16 = math.exp %15 : vector<4x8x8xf32>
    %cst_15 = arith.constant dense<0.000000e+00> : vector<4x8xf32>
    %17 = vector.multi_reduction <add>, %16, %cst_15 [2] : vector<4x8x8xf32> to vector<4x8xf32>
    %18 = vector.shape_cast %17 : vector<4x8xf32> to vector<4x8x1xf32>
    %19 = arith.truncf %16 : vector<4x8x8xf32> to vector<4x8x8xbf16>
    "tpu.trace_start"() <{level = 10 : i32, message = "hqk,hkd->hqd"}> : () -> ()
    %cst_16 = arith.constant dense<0.000000e+00> : vector<4x8x16xf32>
    %20 = tpu.matmul %19, %5, %cst_16 {dimension_numbers = #tpu.dot_dimension_numbers<[2], [1], [1], [2], [0, 0, 0, 1, 1, 2], [0], [0]>} : vector<4x8x8xbf16>, vector<4x8x16xbf16>, vector<4x8x16xf32> -> vector<4x8x16xf32>
    "tpu.trace_stop"() : () -> ()
    %21 = tpu.reciprocal %18 {approx = true} : vector<4x8x1xf32> -> vector<4x8x1xf32>
    %22 = vector.broadcast %21 : vector<4x8x1xf32> to vector<4x8x16xf32>
    %23 = arith.mulf %20, %22 : vector<4x8x16xf32>
    %24 = arith.truncf %23 : vector<4x8x16xf32> to vector<4x8x16xbf16>
    %c0_17 = arith.constant 0 : index
    %c0_18 = arith.constant 0 : index
    %c0_19 = arith.constant 0 : index
    %c0_20 = arith.constant 0 : index
    %25 = vector.load %arg5[%c0_17, %c0_18, %c0_19, %c0_20] : memref<1x4x8x16xbf16, #tpu.memory_space<vmem>>, vector<1x4x8x16xbf16>
    %26 = vector.shape_cast %25 : vector<1x4x8x16xbf16> to vector<4x8x16xbf16>
    %27 = vector.shape_cast %24 : vector<4x8x16xbf16> to vector<1x4x8x16xbf16>
    tpu.vector_store %arg5[%c0_17, %c0_18, %c0_19, %c0_20], %27 {strides = array<i32>} : memref<1x4x8x16xbf16, #tpu.memory_space<vmem>>, vector<1x4x8x16xbf16>,
    return
  }
  func.func @transform_0(%arg0: i32) -> (i32, i32, i32, i32) {
    %c0_i32 = arith.constant 0 : i32
    %c0_i32_0 = arith.constant 0 : i32
    %c0_i32_1 = arith.constant 0 : i32
    %c0_i32_2 = arith.constant 0 : i32
    return %arg0, %c0_i32, %c0_i32_0, %c0_i32_1 : i32, i32, i32, i32
  }
  func.func @transform_1(%arg0: i32) -> (i32, i32, i32, i32) {
    %c0_i32 = arith.constant 0 : i32
    %c0_i32_0 = arith.constant 0 : i32
    %c0_i32_1 = arith.constant 0 : i32
    %c0_i32_2 = arith.constant 0 : i32
    return %arg0, %c0_i32, %c0_i32_0, %c0_i32_1 : i32, i32, i32, i32
  }
  func.func @transform_2(%arg0: i32) -> (i32, i32, i32, i32) {
    %c0_i32 = arith.constant 0 : i32
    %c0_i32_0 = arith.constant 0 : i32
    %c0_i32_1 = arith.constant 0 : i32
    %c0_i32_2 = arith.constant 0 : i32
    return %arg0, %c0_i32, %c0_i32_0, %c0_i32_1 : i32, i32, i32, i32
  }
  func.func @transform_3(%arg0: i32) -> (i32, i32, i32) {
    %c0_i32 = arith.constant 0 : i32
    %c0_i32_0 = arith.constant 0 : i32
    %c0_i32_1 = arith.constant 0 : i32
    return %arg0, %c0_i32, %c0_i32_0 : i32, i32, i32
  }
  func.func @transform_4(%arg0: i32) -> (i32, i32, i32, i32) {
    %c0_i32 = arith.constant 0 : i32
    %c0_i32_0 = arith.constant 0 : i32
    %c0_i32_1 = arith.constant 0 : i32
    %c0_i32_2 = arith.constant 0 : i32
    return %arg0, %c0_i32, %c0_i32_0, %c0_i32_1 : i32, i32, i32, i32
  }
}

module attributes {stable_mosaic.version = 11 : i64} {
  func.func @_linear_res_kernel(%arg0: i32, %arg1: memref<16x64xbf16, #tpu.memory_space<vmem>>, %arg2: memref<64x64xbf16, #tpu.memory_space<vmem>>, %arg3: memref<1x64xf32, #tpu.memory_space<vmem>>, %arg4: memref<16x64xbf16, #tpu.memory_space<vmem>>, %arg5: memref<16x64xbf16, #tpu.memory_space<vmem>>) attributes {dimension_semantics = [#tpu.dimension_semantics<parallel>], iteration_bounds = array<i64: 1>, scalar_prefetch = 0 : i64, scratch_operands = 0 : i64, tpu.core_type = #tpu.core_type<tc>, window_params = [{transform_indices = @transform_0, window_bounds = array<i64: 16, 64>}, {pipeline_mode = #tpu.pipeline_mode<synchronous>, transform_indices = @transform_1, window_bounds = array<i64: 64, 64>}, {pipeline_mode = #tpu.pipeline_mode<synchronous>, transform_indices = @transform_2, window_bounds = array<i64: 1, 64>}, {transform_indices = @transform_3, window_bounds = array<i64: 16, 64>}, {transform_indices = @transform_4, window_bounds = array<i64: 16, 64>}]} {
    %c0 = arith.constant 0 : index
    %c0_0 = arith.constant 0 : index
    %0 = vector.load %arg1[%c0, %c0_0] : memref<16x64xbf16, #tpu.memory_space<vmem>>, vector<16x64xbf16>
    %c0_1 = arith.constant 0 : index
    %c0_2 = arith.constant 0 : index
    %1 = vector.load %arg2[%c0_1, %c0_2] : memref<64x64xbf16, #tpu.memory_space<vmem>>, vector<64x64xbf16>
    %cst = arith.constant dense<0.000000e+00> : vector<16x64xf32>
    %2 = tpu.matmul %0, %1, %cst {dimension_numbers = #tpu.dot_dimension_numbers<[1], [0], [0], [1], [0, 0, 1, 1], [], []>} : vector<16x64xbf16>, vector<64x64xbf16>, vector<16x64xf32> -> vector<16x64xf32>
    %c0_3 = arith.constant 0 : index
    %c0_4 = arith.constant 0 : index
    %3 = vector.load %arg3[%c0_3, %c0_4] : memref<1x64xf32, #tpu.memory_space<vmem>>, vector<1x64xf32>
    %4 = vector.broadcast %3 : vector<1x64xf32> to vector<16x64xf32>
    %5 = arith.addf %2, %4 : vector<16x64xf32>
    %c0_5 = arith.constant 0 : index
    %c0_6 = arith.constant 0 : index
    %6 = vector.load %arg4[%c0_5, %c0_6] : memref<16x64xbf16, #tpu.memory_space<vmem>>, vector<16x64xbf16>
    %7 = arith.extf %6 : vector<16x64xbf16> to vector<16x64xf32>
    %8 = arith.addf %5, %7 : vector<16x64xf32>
    %9 = arith.truncf %8 : vector<16x64xf32> to vector<16x64xbf16>
    %c0_7 = arith.constant 0 : index
    %c0_8 = arith.constant 0 : index
    %10 = vector.load %arg5[%c0_7, %c0_8] : memref<16x64xbf16, #tpu.memory_space<vmem>>, vector<16x64xbf16>
    tpu.vector_store %arg5[%c0_7, %c0_8], %9 {strides = array<i32>} : memref<16x64xbf16, #tpu.memory_space<vmem>>, vector<16x64xbf16>,
    return
  }
  func.func @transform_0(%arg0: i32) -> (i32, i32) {
    %c0_i32 = arith.constant 0 : i32
    %c0_i32_0 = arith.constant 0 : i32
    return %arg0, %c0_i32 : i32, i32
  }
  func.func @transform_1(%arg0: i32) -> (i32, i32) {
    %c0_i32 = arith.constant 0 : i32
    %c0_i32_0 = arith.constant 0 : i32
    %c0_i32_1 = arith.constant 0 : i32
    return %c0_i32, %c0_i32_0 : i32, i32
  }
  func.func @transform_2(%arg0: i32) -> (i32, i32) {
    %c0_i32 = arith.constant 0 : i32
    %c0_i32_0 = arith.constant 0 : i32
    %c0_i32_1 = arith.constant 0 : i32
    return %c0_i32, %c0_i32_0 : i32, i32
  }
  func.func @transform_3(%arg0: i32) -> (i32, i32) {
    %c0_i32 = arith.constant 0 : i32
    %c0_i32_0 = arith.constant 0 : i32
    return %arg0, %c0_i32 : i32, i32
  }
  func.func @transform_4(%arg0: i32) -> (i32, i32) {
    %c0_i32 = arith.constant 0 : i32
    %c0_i32_0 = arith.constant 0 : i32
    return %arg0, %c0_i32 : i32, i32
  }
}

module attributes {stable_mosaic.version = 11 : i64} {
  func.func @_ln_linear_kernel(%arg0: i32, %arg1: memref<16x64xbf16, #tpu.memory_space<vmem>>, %arg2: memref<1x64xf32, #tpu.memory_space<vmem>>, %arg3: memref<1x64xf32, #tpu.memory_space<vmem>>, %arg4: memref<64x256xbf16, #tpu.memory_space<vmem>>, %arg5: memref<1x256xf32, #tpu.memory_space<vmem>>, %arg6: memref<16x256xbf16, #tpu.memory_space<vmem>>) attributes {dimension_semantics = [#tpu.dimension_semantics<parallel>], iteration_bounds = array<i64: 1>, scalar_prefetch = 0 : i64, scratch_operands = 0 : i64, tpu.core_type = #tpu.core_type<tc>, window_params = [{transform_indices = @transform_0, window_bounds = array<i64: 16, 64>}, {pipeline_mode = #tpu.pipeline_mode<synchronous>, transform_indices = @transform_1, window_bounds = array<i64: 1, 64>}, {pipeline_mode = #tpu.pipeline_mode<synchronous>, transform_indices = @transform_2, window_bounds = array<i64: 1, 64>}, {pipeline_mode = #tpu.pipeline_mode<synchronous>, transform_indices = @transform_3, window_bounds = array<i64: 64, 256>}, {pipeline_mode = #tpu.pipeline_mode<synchronous>, transform_indices = @transform_4, window_bounds = array<i64: 1, 256>}, {transform_indices = @transform_5, window_bounds = array<i64: 16, 256>}]} {
    %c0 = arith.constant 0 : index
    %c0_0 = arith.constant 0 : index
    %0 = vector.load %arg1[%c0, %c0_0] : memref<16x64xbf16, #tpu.memory_space<vmem>>, vector<16x64xbf16>
    %1 = arith.extf %0 : vector<16x64xbf16> to vector<16x64xf32>
    %cst = arith.constant dense<0.000000e+00> : vector<16xf32>
    %2 = vector.multi_reduction <add>, %1, %cst [1] : vector<16x64xf32> to vector<16xf32>
    %3 = vector.shape_cast %2 : vector<16xf32> to vector<16x1xf32>
    %cst_1 = arith.constant 6.400000e+01 : f32
    %4 = vector.broadcast %cst_1 : f32 to vector<16x1xf32>
    %5 = arith.divf %3, %4 : vector<16x1xf32>
    %6 = vector.broadcast %5 : vector<16x1xf32> to vector<16x64xf32>
    %7 = arith.subf %1, %6 : vector<16x64xf32>
    %8 = arith.mulf %7, %7 : vector<16x64xf32>
    %cst_2 = arith.constant dense<0.000000e+00> : vector<16xf32>
    %9 = vector.multi_reduction <add>, %8, %cst_2 [1] : vector<16x64xf32> to vector<16xf32>
    %10 = vector.shape_cast %9 : vector<16xf32> to vector<16x1xf32>
    %cst_3 = arith.constant 6.400000e+01 : f32
    %11 = vector.broadcast %cst_3 : f32 to vector<16x1xf32>
    %12 = arith.divf %10, %11 : vector<16x1xf32>
    %cst_4 = arith.constant 9.99999974E-6 : f32
    %13 = vector.broadcast %cst_4 : f32 to vector<16x1xf32>
    %14 = arith.addf %12, %13 : vector<16x1xf32>
    %15 = math.rsqrt %14 : vector<16x1xf32>
    %16 = vector.broadcast %15 : vector<16x1xf32> to vector<16x64xf32>
    %17 = arith.mulf %7, %16 : vector<16x64xf32>
    %c0_5 = arith.constant 0 : index
    %c0_6 = arith.constant 0 : index
    %18 = vector.load %arg2[%c0_5, %c0_6] : memref<1x64xf32, #tpu.memory_space<vmem>>, vector<1x64xf32>
    %19 = vector.broadcast %18 : vector<1x64xf32> to vector<16x64xf32>
    %20 = arith.mulf %17, %19 : vector<16x64xf32>
    %c0_7 = arith.constant 0 : index
    %c0_8 = arith.constant 0 : index
    %21 = vector.load %arg3[%c0_7, %c0_8] : memref<1x64xf32, #tpu.memory_space<vmem>>, vector<1x64xf32>
    %22 = vector.broadcast %21 : vector<1x64xf32> to vector<16x64xf32>
    %23 = arith.addf %20, %22 : vector<16x64xf32>
    %24 = arith.truncf %23 : vector<16x64xf32> to vector<16x64xbf16>
    %c0_9 = arith.constant 0 : index
    %c0_10 = arith.constant 0 : index
    %25 = vector.load %arg4[%c0_9, %c0_10] : memref<64x256xbf16, #tpu.memory_space<vmem>>, vector<64x256xbf16>
    %cst_11 = arith.constant dense<0.000000e+00> : vector<16x256xf32>
    %26 = tpu.matmul %24, %25, %cst_11 {dimension_numbers = #tpu.dot_dimension_numbers<[1], [0], [0], [1], [0, 0, 1, 1], [], []>} : vector<16x64xbf16>, vector<64x256xbf16>, vector<16x256xf32> -> vector<16x256xf32>
    %c0_12 = arith.constant 0 : index
    %c0_13 = arith.constant 0 : index
    %27 = vector.load %arg5[%c0_12, %c0_13] : memref<1x256xf32, #tpu.memory_space<vmem>>, vector<1x256xf32>
    %28 = vector.broadcast %27 : vector<1x256xf32> to vector<16x256xf32>
    %29 = arith.addf %26, %28 : vector<16x256xf32>
    %cst_14 = arith.constant 5.000000e-01 : f32
    %30 = vector.broadcast %cst_14 : f32 to vector<16x256xf32>
    %31 = arith.mulf %29, %30 : vector<16x256xf32>
    %cst_15 = arith.constant 0.707106769 : f32
    %32 = vector.broadcast %cst_15 : f32 to vector<16x256xf32>
    %33 = arith.mulf %29, %32 : vector<16x256xf32>
    %cst_16 = arith.constant 0.000000e+00 : f32
    %34 = vector.broadcast %cst_16 : f32 to vector<16x256xf32>
    %35 = arith.cmpf oge, %33, %34 : vector<16x256xf32>
    %cst_17 = arith.constant 1.000000e+00 : f32
    %cst_18 = arith.constant -1.000000e+00 : f32
    %36 = vector.broadcast %cst_17 : f32 to vector<16x256xf32>
    %37 = vector.broadcast %cst_18 : f32 to vector<16x256xf32>
    %38 = arith.select %35, %36, %37 : vector<16x256xi1>, vector<16x256xf32>
    %39 = math.absf %33 : vector<16x256xf32>
    %cst_19 = arith.constant 0.327591091 : f32
    %40 = vector.broadcast %cst_19 : f32 to vector<16x256xf32>
    %41 = arith.mulf %40, %39 : vector<16x256xf32>
    %cst_20 = arith.constant 1.000000e+00 : f32
    %42 = vector.broadcast %cst_20 : f32 to vector<16x256xf32>
    %43 = arith.addf %42, %41 : vector<16x256xf32>
    %cst_21 = arith.constant 1.000000e+00 : f32
    %44 = vector.broadcast %cst_21 : f32 to vector<16x256xf32>
    %45 = arith.divf %44, %43 : vector<16x256xf32>
    %cst_22 = arith.constant 1.06140542 : f32
    %46 = vector.broadcast %cst_22 : f32 to vector<16x256xf32>
    %47 = arith.mulf %46, %45 : vector<16x256xf32>
    %cst_23 = arith.constant -1.45315206 : f32
    %48 = vector.broadcast %cst_23 : f32 to vector<16x256xf32>
    %49 = arith.addf %47, %48 : vector<16x256xf32>
    %50 = arith.mulf %49, %45 : vector<16x256xf32>
    %cst_24 = arith.constant 1.42141378 : f32
    %51 = vector.broadcast %cst_24 : f32 to vector<16x256xf32>
    %52 = arith.addf %50, %51 : vector<16x256xf32>
    %53 = arith.mulf %52, %45 : vector<16x256xf32>
    %cst_25 = arith.constant -0.284496725 : f32
    %54 = vector.broadcast %cst_25 : f32 to vector<16x256xf32>
    %55 = arith.addf %53, %54 : vector<16x256xf32>
    %56 = arith.mulf %55, %45 : vector<16x256xf32>
    %cst_26 = arith.constant 0.254829586 : f32
    %57 = vector.broadcast %cst_26 : f32 to vector<16x256xf32>
    %58 = arith.addf %56, %57 : vector<16x256xf32>
    %59 = arith.mulf %58, %45 : vector<16x256xf32>
    %cst_27 = arith.constant 0.000000e+00 : f32
    %60 = vector.broadcast %cst_27 : f32 to vector<16x256xf32>
    %61 = arith.subf %60, %39 : vector<16x256xf32>
    %62 = arith.mulf %61, %39 : vector<16x256xf32>
    %63 = math.exp %62 : vector<16x256xf32>
    %64 = arith.mulf %59, %63 : vector<16x256xf32>
    %cst_28 = arith.constant 1.000000e+00 : f32
    %65 = vector.broadcast %cst_28 : f32 to vector<16x256xf32>
    %66 = arith.subf %65, %64 : vector<16x256xf32>
    %67 = arith.mulf %38, %66 : vector<16x256xf32>
    %cst_29 = arith.constant 1.000000e+00 : f32
    %68 = vector.broadcast %cst_29 : f32 to vector<16x256xf32>
    %69 = arith.addf %68, %67 : vector<16x256xf32>
    %70 = arith.mulf %31, %69 : vector<16x256xf32>
    %71 = arith.truncf %70 : vector<16x256xf32> to vector<16x256xbf16>
    %c0_30 = arith.constant 0 : index
    %c0_31 = arith.constant 0 : index
    %72 = vector.load %arg6[%c0_30, %c0_31] : memref<16x256xbf16, #tpu.memory_space<vmem>>, vector<16x256xbf16>
    tpu.vector_store %arg6[%c0_30, %c0_31], %71 {strides = array<i32>} : memref<16x256xbf16, #tpu.memory_space<vmem>>, vector<16x256xbf16>,
    return
  }
  func.func @transform_0(%arg0: i32) -> (i32, i32) {
    %c0_i32 = arith.constant 0 : i32
    %c0_i32_0 = arith.constant 0 : i32
    return %arg0, %c0_i32 : i32, i32
  }
  func.func @transform_1(%arg0: i32) -> (i32, i32) {
    %c0_i32 = arith.constant 0 : i32
    %c0_i32_0 = arith.constant 0 : i32
    %c0_i32_1 = arith.constant 0 : i32
    return %c0_i32, %c0_i32_0 : i32, i32
  }
  func.func @transform_2(%arg0: i32) -> (i32, i32) {
    %c0_i32 = arith.constant 0 : i32
    %c0_i32_0 = arith.constant 0 : i32
    %c0_i32_1 = arith.constant 0 : i32
    return %c0_i32, %c0_i32_0 : i32, i32
  }
  func.func @transform_3(%arg0: i32) -> (i32, i32) {
    %c0_i32 = arith.constant 0 : i32
    %c0_i32_0 = arith.constant 0 : i32
    %c0_i32_1 = arith.constant 0 : i32
    return %c0_i32, %c0_i32_0 : i32, i32
  }
  func.func @transform_4(%arg0: i32) -> (i32, i32) {
    %c0_i32 = arith.constant 0 : i32
    %c0_i32_0 = arith.constant 0 : i32
    %c0_i32_1 = arith.constant 0 : i32
    return %c0_i32, %c0_i32_0 : i32, i32
  }
  func.func @transform_5(%arg0: i32) -> (i32, i32) {
    %c0_i32 = arith.constant 0 : i32
    %c0_i32_0 = arith.constant 0 : i32
    return %arg0, %c0_i32 : i32, i32
  }
}

module attributes {stable_mosaic.version = 11 : i64} {
  func.func @_linear_res_kernel(%arg0: i32, %arg1: memref<16x256xbf16, #tpu.memory_space<vmem>>, %arg2: memref<256x64xbf16, #tpu.memory_space<vmem>>, %arg3: memref<1x64xf32, #tpu.memory_space<vmem>>, %arg4: memref<16x64xbf16, #tpu.memory_space<vmem>>, %arg5: memref<16x64xbf16, #tpu.memory_space<vmem>>) attributes {dimension_semantics = [#tpu.dimension_semantics<parallel>], iteration_bounds = array<i64: 1>, scalar_prefetch = 0 : i64, scratch_operands = 0 : i64, tpu.core_type = #tpu.core_type<tc>, window_params = [{transform_indices = @transform_0, window_bounds = array<i64: 16, 256>}, {pipeline_mode = #tpu.pipeline_mode<synchronous>, transform_indices = @transform_1, window_bounds = array<i64: 256, 64>}, {pipeline_mode = #tpu.pipeline_mode<synchronous>, transform_indices = @transform_2, window_bounds = array<i64: 1, 64>}, {transform_indices = @transform_3, window_bounds = array<i64: 16, 64>}, {transform_indices = @transform_4, window_bounds = array<i64: 16, 64>}]} {
    %c0 = arith.constant 0 : index
    %c0_0 = arith.constant 0 : index
    %0 = vector.load %arg1[%c0, %c0_0] : memref<16x256xbf16, #tpu.memory_space<vmem>>, vector<16x256xbf16>
    %c0_1 = arith.constant 0 : index
    %c0_2 = arith.constant 0 : index
    %1 = vector.load %arg2[%c0_1, %c0_2] : memref<256x64xbf16, #tpu.memory_space<vmem>>, vector<256x64xbf16>
    %cst = arith.constant dense<0.000000e+00> : vector<16x64xf32>
    %2 = tpu.matmul %0, %1, %cst {dimension_numbers = #tpu.dot_dimension_numbers<[1], [0], [0], [1], [0, 0, 1, 1], [], []>} : vector<16x256xbf16>, vector<256x64xbf16>, vector<16x64xf32> -> vector<16x64xf32>
    %c0_3 = arith.constant 0 : index
    %c0_4 = arith.constant 0 : index
    %3 = vector.load %arg3[%c0_3, %c0_4] : memref<1x64xf32, #tpu.memory_space<vmem>>, vector<1x64xf32>
    %4 = vector.broadcast %3 : vector<1x64xf32> to vector<16x64xf32>
    %5 = arith.addf %2, %4 : vector<16x64xf32>
    %c0_5 = arith.constant 0 : index
    %c0_6 = arith.constant 0 : index
    %6 = vector.load %arg4[%c0_5, %c0_6] : memref<16x64xbf16, #tpu.memory_space<vmem>>, vector<16x64xbf16>
    %7 = arith.extf %6 : vector<16x64xbf16> to vector<16x64xf32>
    %8 = arith.addf %5, %7 : vector<16x64xf32>
    %9 = arith.truncf %8 : vector<16x64xf32> to vector<16x64xbf16>
    %c0_7 = arith.constant 0 : index
    %c0_8 = arith.constant 0 : index
    %10 = vector.load %arg5[%c0_7, %c0_8] : memref<16x64xbf16, #tpu.memory_space<vmem>>, vector<16x64xbf16>
    tpu.vector_store %arg5[%c0_7, %c0_8], %9 {strides = array<i32>} : memref<16x64xbf16, #tpu.memory_space<vmem>>, vector<16x64xbf16>,
    return
  }
  func.func @transform_0(%arg0: i32) -> (i32, i32) {
    %c0_i32 = arith.constant 0 : i32
    %c0_i32_0 = arith.constant 0 : i32
    return %arg0, %c0_i32 : i32, i32
  }
  func.func @transform_1(%arg0: i32) -> (i32, i32) {
    %c0_i32 = arith.constant 0 : i32
    %c0_i32_0 = arith.constant 0 : i32
    %c0_i32_1 = arith.constant 0 : i32
    return %c0_i32, %c0_i32_0 : i32, i32
  }
  func.func @transform_2(%arg0: i32) -> (i32, i32) {
    %c0_i32 = arith.constant 0 : i32
    %c0_i32_0 = arith.constant 0 : i32
    %c0_i32_1 = arith.constant 0 : i32
    return %c0_i32, %c0_i32_0 : i32, i32
  }
  func.func @transform_3(%arg0: i32) -> (i32, i32) {
    %c0_i32 = arith.constant 0 : i32
    %c0_i32_0 = arith.constant 0 : i32
    return %arg0, %c0_i32 : i32, i32
  }
  func.func @transform_4(%arg0: i32) -> (i32, i32) {
    %c0_i32 = arith.constant 0 : i32
    %c0_i32_0 = arith.constant 0 : i32
    return %arg0, %c0_i32 : i32, i32
  }
}

module attributes {stable_mosaic.version = 11 : i64} {
  func.func @_ln_linear_kernel(%arg0: i32, %arg1: memref<16x64xbf16, #tpu.memory_space<vmem>>, %arg2: memref<1x64xf32, #tpu.memory_space<vmem>>, %arg3: memref<1x64xf32, #tpu.memory_space<vmem>>, %arg4: memref<64x64xbf16, #tpu.memory_space<vmem>>, %arg5: memref<1x64xf32, #tpu.memory_space<vmem>>, %arg6: memref<16x64xbf16, #tpu.memory_space<vmem>>) attributes {dimension_semantics = [#tpu.dimension_semantics<parallel>], iteration_bounds = array<i64: 1>, scalar_prefetch = 0 : i64, scratch_operands = 0 : i64, tpu.core_type = #tpu.core_type<tc>, window_params = [{transform_indices = @transform_0, window_bounds = array<i64: 16, 64>}, {pipeline_mode = #tpu.pipeline_mode<synchronous>, transform_indices = @transform_1, window_bounds = array<i64: 1, 64>}, {pipeline_mode = #tpu.pipeline_mode<synchronous>, transform_indices = @transform_2, window_bounds = array<i64: 1, 64>}, {pipeline_mode = #tpu.pipeline_mode<synchronous>, transform_indices = @transform_3, window_bounds = array<i64: 64, 64>}, {pipeline_mode = #tpu.pipeline_mode<synchronous>, transform_indices = @transform_4, window_bounds = array<i64: 1, 64>}, {transform_indices = @transform_5, window_bounds = array<i64: 16, 64>}]} {
    %c0 = arith.constant 0 : index
    %c0_0 = arith.constant 0 : index
    %0 = vector.load %arg1[%c0, %c0_0] : memref<16x64xbf16, #tpu.memory_space<vmem>>, vector<16x64xbf16>
    %1 = arith.extf %0 : vector<16x64xbf16> to vector<16x64xf32>
    %cst = arith.constant dense<0.000000e+00> : vector<16xf32>
    %2 = vector.multi_reduction <add>, %1, %cst [1] : vector<16x64xf32> to vector<16xf32>
    %3 = vector.shape_cast %2 : vector<16xf32> to vector<16x1xf32>
    %cst_1 = arith.constant 6.400000e+01 : f32
    %4 = vector.broadcast %cst_1 : f32 to vector<16x1xf32>
    %5 = arith.divf %3, %4 : vector<16x1xf32>
    %6 = vector.broadcast %5 : vector<16x1xf32> to vector<16x64xf32>
    %7 = arith.subf %1, %6 : vector<16x64xf32>
    %8 = arith.mulf %7, %7 : vector<16x64xf32>
    %cst_2 = arith.constant dense<0.000000e+00> : vector<16xf32>
    %9 = vector.multi_reduction <add>, %8, %cst_2 [1] : vector<16x64xf32> to vector<16xf32>
    %10 = vector.shape_cast %9 : vector<16xf32> to vector<16x1xf32>
    %cst_3 = arith.constant 6.400000e+01 : f32
    %11 = vector.broadcast %cst_3 : f32 to vector<16x1xf32>
    %12 = arith.divf %10, %11 : vector<16x1xf32>
    %cst_4 = arith.constant 9.99999974E-6 : f32
    %13 = vector.broadcast %cst_4 : f32 to vector<16x1xf32>
    %14 = arith.addf %12, %13 : vector<16x1xf32>
    %15 = math.rsqrt %14 : vector<16x1xf32>
    %16 = vector.broadcast %15 : vector<16x1xf32> to vector<16x64xf32>
    %17 = arith.mulf %7, %16 : vector<16x64xf32>
    %c0_5 = arith.constant 0 : index
    %c0_6 = arith.constant 0 : index
    %18 = vector.load %arg2[%c0_5, %c0_6] : memref<1x64xf32, #tpu.memory_space<vmem>>, vector<1x64xf32>
    %19 = vector.broadcast %18 : vector<1x64xf32> to vector<16x64xf32>
    %20 = arith.mulf %17, %19 : vector<16x64xf32>
    %c0_7 = arith.constant 0 : index
    %c0_8 = arith.constant 0 : index
    %21 = vector.load %arg3[%c0_7, %c0_8] : memref<1x64xf32, #tpu.memory_space<vmem>>, vector<1x64xf32>
    %22 = vector.broadcast %21 : vector<1x64xf32> to vector<16x64xf32>
    %23 = arith.addf %20, %22 : vector<16x64xf32>
    %24 = arith.truncf %23 : vector<16x64xf32> to vector<16x64xbf16>
    %c0_9 = arith.constant 0 : index
    %c0_10 = arith.constant 0 : index
    %25 = vector.load %arg4[%c0_9, %c0_10] : memref<64x64xbf16, #tpu.memory_space<vmem>>, vector<64x64xbf16>
    %cst_11 = arith.constant dense<0.000000e+00> : vector<16x64xf32>
    %26 = tpu.matmul %24, %25, %cst_11 {dimension_numbers = #tpu.dot_dimension_numbers<[1], [0], [0], [1], [0, 0, 1, 1], [], []>} : vector<16x64xbf16>, vector<64x64xbf16>, vector<16x64xf32> -> vector<16x64xf32>
    %c0_12 = arith.constant 0 : index
    %c0_13 = arith.constant 0 : index
    %27 = vector.load %arg5[%c0_12, %c0_13] : memref<1x64xf32, #tpu.memory_space<vmem>>, vector<1x64xf32>
    %28 = vector.broadcast %27 : vector<1x64xf32> to vector<16x64xf32>
    %29 = arith.addf %26, %28 : vector<16x64xf32>
    %cst_14 = arith.constant 5.000000e-01 : f32
    %30 = vector.broadcast %cst_14 : f32 to vector<16x64xf32>
    %31 = arith.mulf %29, %30 : vector<16x64xf32>
    %cst_15 = arith.constant 0.707106769 : f32
    %32 = vector.broadcast %cst_15 : f32 to vector<16x64xf32>
    %33 = arith.mulf %29, %32 : vector<16x64xf32>
    %cst_16 = arith.constant 0.000000e+00 : f32
    %34 = vector.broadcast %cst_16 : f32 to vector<16x64xf32>
    %35 = arith.cmpf oge, %33, %34 : vector<16x64xf32>
    %cst_17 = arith.constant 1.000000e+00 : f32
    %cst_18 = arith.constant -1.000000e+00 : f32
    %36 = vector.broadcast %cst_17 : f32 to vector<16x64xf32>
    %37 = vector.broadcast %cst_18 : f32 to vector<16x64xf32>
    %38 = arith.select %35, %36, %37 : vector<16x64xi1>, vector<16x64xf32>
    %39 = math.absf %33 : vector<16x64xf32>
    %cst_19 = arith.constant 0.327591091 : f32
    %40 = vector.broadcast %cst_19 : f32 to vector<16x64xf32>
    %41 = arith.mulf %40, %39 : vector<16x64xf32>
    %cst_20 = arith.constant 1.000000e+00 : f32
    %42 = vector.broadcast %cst_20 : f32 to vector<16x64xf32>
    %43 = arith.addf %42, %41 : vector<16x64xf32>
    %cst_21 = arith.constant 1.000000e+00 : f32
    %44 = vector.broadcast %cst_21 : f32 to vector<16x64xf32>
    %45 = arith.divf %44, %43 : vector<16x64xf32>
    %cst_22 = arith.constant 1.06140542 : f32
    %46 = vector.broadcast %cst_22 : f32 to vector<16x64xf32>
    %47 = arith.mulf %46, %45 : vector<16x64xf32>
    %cst_23 = arith.constant -1.45315206 : f32
    %48 = vector.broadcast %cst_23 : f32 to vector<16x64xf32>
    %49 = arith.addf %47, %48 : vector<16x64xf32>
    %50 = arith.mulf %49, %45 : vector<16x64xf32>
    %cst_24 = arith.constant 1.42141378 : f32
    %51 = vector.broadcast %cst_24 : f32 to vector<16x64xf32>
    %52 = arith.addf %50, %51 : vector<16x64xf32>
    %53 = arith.mulf %52, %45 : vector<16x64xf32>
    %cst_25 = arith.constant -0.284496725 : f32
    %54 = vector.broadcast %cst_25 : f32 to vector<16x64xf32>
    %55 = arith.addf %53, %54 : vector<16x64xf32>
    %56 = arith.mulf %55, %45 : vector<16x64xf32>
    %cst_26 = arith.constant 0.254829586 : f32
    %57 = vector.broadcast %cst_26 : f32 to vector<16x64xf32>
    %58 = arith.addf %56, %57 : vector<16x64xf32>
    %59 = arith.mulf %58, %45 : vector<16x64xf32>
    %cst_27 = arith.constant 0.000000e+00 : f32
    %60 = vector.broadcast %cst_27 : f32 to vector<16x64xf32>
    %61 = arith.subf %60, %39 : vector<16x64xf32>
    %62 = arith.mulf %61, %39 : vector<16x64xf32>
    %63 = math.exp %62 : vector<16x64xf32>
    %64 = arith.mulf %59, %63 : vector<16x64xf32>
    %cst_28 = arith.constant 1.000000e+00 : f32
    %65 = vector.broadcast %cst_28 : f32 to vector<16x64xf32>
    %66 = arith.subf %65, %64 : vector<16x64xf32>
    %67 = arith.mulf %38, %66 : vector<16x64xf32>
    %cst_29 = arith.constant 1.000000e+00 : f32
    %68 = vector.broadcast %cst_29 : f32 to vector<16x64xf32>
    %69 = arith.addf %68, %67 : vector<16x64xf32>
    %70 = arith.mulf %31, %69 : vector<16x64xf32>
    %71 = arith.truncf %70 : vector<16x64xf32> to vector<16x64xbf16>
    %c0_30 = arith.constant 0 : index
    %c0_31 = arith.constant 0 : index
    %72 = vector.load %arg6[%c0_30, %c0_31] : memref<16x64xbf16, #tpu.memory_space<vmem>>, vector<16x64xbf16>
    tpu.vector_store %arg6[%c0_30, %c0_31], %71 {strides = array<i32>} : memref<16x64xbf16, #tpu.memory_space<vmem>>, vector<16x64xbf16>,
    return
  }
  func.func @transform_0(%arg0: i32) -> (i32, i32) {
    %c0_i32 = arith.constant 0 : i32
    %c0_i32_0 = arith.constant 0 : i32
    return %arg0, %c0_i32 : i32, i32
  }
  func.func @transform_1(%arg0: i32) -> (i32, i32) {
    %c0_i32 = arith.constant 0 : i32
    %c0_i32_0 = arith.constant 0 : i32
    %c0_i32_1 = arith.constant 0 : i32
    return %c0_i32, %c0_i32_0 : i32, i32
  }
  func.func @transform_2(%arg0: i32) -> (i32, i32) {
    %c0_i32 = arith.constant 0 : i32
    %c0_i32_0 = arith.constant 0 : i32
    %c0_i32_1 = arith.constant 0 : i32
    return %c0_i32, %c0_i32_0 : i32, i32
  }
  func.func @transform_3(%arg0: i32) -> (i32, i32) {
    %c0_i32 = arith.constant 0 : i32
    %c0_i32_0 = arith.constant 0 : i32
    %c0_i32_1 = arith.constant 0 : i32
    return %c0_i32, %c0_i32_0 : i32, i32
  }
  func.func @transform_4(%arg0: i32) -> (i32, i32) {
    %c0_i32 = arith.constant 0 : i32
    %c0_i32_0 = arith.constant 0 : i32
    %c0_i32_1 = arith.constant 0 : i32
    return %c0_i32, %c0_i32_0 : i32, i32
  }
  func.func @transform_5(%arg0: i32) -> (i32, i32) {
    %c0_i32 = arith.constant 0 : i32
    %c0_i32_0 = arith.constant 0 : i32
    return %arg0, %c0_i32 : i32, i32
  }
}

module attributes {stable_mosaic.version = 11 : i64} {
  func.func @_ln_linear_kernel(%arg0: i32, %arg1: memref<16x64xbf16, #tpu.memory_space<vmem>>, %arg2: memref<1x64xf32, #tpu.memory_space<vmem>>, %arg3: memref<1x64xf32, #tpu.memory_space<vmem>>, %arg4: memref<64x128xbf16, #tpu.memory_space<vmem>>, %arg5: memref<1x128xf32, #tpu.memory_space<vmem>>, %arg6: memref<16x128xf32, #tpu.memory_space<vmem>>) attributes {dimension_semantics = [#tpu.dimension_semantics<parallel>], iteration_bounds = array<i64: 1>, scalar_prefetch = 0 : i64, scratch_operands = 0 : i64, tpu.core_type = #tpu.core_type<tc>, window_params = [{transform_indices = @transform_0, window_bounds = array<i64: 16, 64>}, {pipeline_mode = #tpu.pipeline_mode<synchronous>, transform_indices = @transform_1, window_bounds = array<i64: 1, 64>}, {pipeline_mode = #tpu.pipeline_mode<synchronous>, transform_indices = @transform_2, window_bounds = array<i64: 1, 64>}, {pipeline_mode = #tpu.pipeline_mode<synchronous>, transform_indices = @transform_3, window_bounds = array<i64: 64, 128>}, {pipeline_mode = #tpu.pipeline_mode<synchronous>, transform_indices = @transform_4, window_bounds = array<i64: 1, 128>}, {transform_indices = @transform_5, window_bounds = array<i64: 16, 128>}]} {
    %c0 = arith.constant 0 : index
    %c0_0 = arith.constant 0 : index
    %0 = vector.load %arg1[%c0, %c0_0] : memref<16x64xbf16, #tpu.memory_space<vmem>>, vector<16x64xbf16>
    %1 = arith.extf %0 : vector<16x64xbf16> to vector<16x64xf32>
    %cst = arith.constant dense<0.000000e+00> : vector<16xf32>
    %2 = vector.multi_reduction <add>, %1, %cst [1] : vector<16x64xf32> to vector<16xf32>
    %3 = vector.shape_cast %2 : vector<16xf32> to vector<16x1xf32>
    %cst_1 = arith.constant 6.400000e+01 : f32
    %4 = vector.broadcast %cst_1 : f32 to vector<16x1xf32>
    %5 = arith.divf %3, %4 : vector<16x1xf32>
    %6 = vector.broadcast %5 : vector<16x1xf32> to vector<16x64xf32>
    %7 = arith.subf %1, %6 : vector<16x64xf32>
    %8 = arith.mulf %7, %7 : vector<16x64xf32>
    %cst_2 = arith.constant dense<0.000000e+00> : vector<16xf32>
    %9 = vector.multi_reduction <add>, %8, %cst_2 [1] : vector<16x64xf32> to vector<16xf32>
    %10 = vector.shape_cast %9 : vector<16xf32> to vector<16x1xf32>
    %cst_3 = arith.constant 6.400000e+01 : f32
    %11 = vector.broadcast %cst_3 : f32 to vector<16x1xf32>
    %12 = arith.divf %10, %11 : vector<16x1xf32>
    %cst_4 = arith.constant 9.99999974E-6 : f32
    %13 = vector.broadcast %cst_4 : f32 to vector<16x1xf32>
    %14 = arith.addf %12, %13 : vector<16x1xf32>
    %15 = math.rsqrt %14 : vector<16x1xf32>
    %16 = vector.broadcast %15 : vector<16x1xf32> to vector<16x64xf32>
    %17 = arith.mulf %7, %16 : vector<16x64xf32>
    %c0_5 = arith.constant 0 : index
    %c0_6 = arith.constant 0 : index
    %18 = vector.load %arg2[%c0_5, %c0_6] : memref<1x64xf32, #tpu.memory_space<vmem>>, vector<1x64xf32>
    %19 = vector.broadcast %18 : vector<1x64xf32> to vector<16x64xf32>
    %20 = arith.mulf %17, %19 : vector<16x64xf32>
    %c0_7 = arith.constant 0 : index
    %c0_8 = arith.constant 0 : index
    %21 = vector.load %arg3[%c0_7, %c0_8] : memref<1x64xf32, #tpu.memory_space<vmem>>, vector<1x64xf32>
    %22 = vector.broadcast %21 : vector<1x64xf32> to vector<16x64xf32>
    %23 = arith.addf %20, %22 : vector<16x64xf32>
    %24 = arith.truncf %23 : vector<16x64xf32> to vector<16x64xbf16>
    %c0_9 = arith.constant 0 : index
    %c0_10 = arith.constant 0 : index
    %25 = vector.load %arg4[%c0_9, %c0_10] : memref<64x128xbf16, #tpu.memory_space<vmem>>, vector<64x128xbf16>
    %cst_11 = arith.constant dense<0.000000e+00> : vector<16x128xf32>
    %26 = tpu.matmul %24, %25, %cst_11 {dimension_numbers = #tpu.dot_dimension_numbers<[1], [0], [0], [1], [0, 0, 1, 1], [], []>} : vector<16x64xbf16>, vector<64x128xbf16>, vector<16x128xf32> -> vector<16x128xf32>
    %c0_12 = arith.constant 0 : index
    %c0_13 = arith.constant 0 : index
    %27 = vector.load %arg5[%c0_12, %c0_13] : memref<1x128xf32, #tpu.memory_space<vmem>>, vector<1x128xf32>
    %28 = vector.broadcast %27 : vector<1x128xf32> to vector<16x128xf32>
    %29 = arith.addf %26, %28 : vector<16x128xf32>
    %c0_14 = arith.constant 0 : index
    %c0_15 = arith.constant 0 : index
    %30 = vector.load %arg6[%c0_14, %c0_15] : memref<16x128xf32, #tpu.memory_space<vmem>>, vector<16x128xf32>
    tpu.vector_store %arg6[%c0_14, %c0_15], %29 {strides = array<i32>} : memref<16x128xf32, #tpu.memory_space<vmem>>, vector<16x128xf32>,
    return
  }
  func.func @transform_0(%arg0: i32) -> (i32, i32) {
    %c0_i32 = arith.constant 0 : i32
    %c0_i32_0 = arith.constant 0 : i32
    return %arg0, %c0_i32 : i32, i32
  }
  func.func @transform_1(%arg0: i32) -> (i32, i32) {
    %c0_i32 = arith.constant 0 : i32
    %c0_i32_0 = arith.constant 0 : i32
    %c0_i32_1 = arith.constant 0 : i32
    return %c0_i32, %c0_i32_0 : i32, i32
  }
  func.func @transform_2(%arg0: i32) -> (i32, i32) {
    %c0_i32 = arith.constant 0 : i32
    %c0_i32_0 = arith.constant 0 : i32
    %c0_i32_1 = arith.constant 0 : i32
    return %c0_i32, %c0_i32_0 : i32, i32
  }
  func.func @transform_3(%arg0: i32) -> (i32, i32) {
    %c0_i32 = arith.constant 0 : i32
    %c0_i32_0 = arith.constant 0 : i32
    %c0_i32_1 = arith.constant 0 : i32
    return %c0_i32, %c0_i32_0 : i32, i32
  }
  func.func @transform_4(%arg0: i32) -> (i32, i32) {
    %c0_i32 = arith.constant 0 : i32
    %c0_i32_0 = arith.constant 0 : i32
    %c0_i32_1 = arith.constant 0 : i32
    return %c0_i32, %c0_i32_0 : i32, i32
  }
  func.func @transform_5(%arg0: i32) -> (i32, i32) {
    %c0_i32 = arith.constant 0 : i32
    %c0_i32_0 = arith.constant 0 : i32
    return %arg0, %c0_i32 : i32, i32
  }
}

</mosaic_0001>

<llo_original>
// kernel: esm2_forward.12
$region0: #{esm2_forward.12}
  #allocation0 [shape = 'u32[]', space=smem, size = 0x4, offset = 0x4, fixed_abs, tag = 'smem constant byte address 0x4 - core index']
  #allocation1 [shape = 'u32[144,128]{1,0:T(1,128)}', space=vmem, size = 0x12000, scoped, tag = 'internal scratch']
  %s0 = inlined_call_operand.vmem [shape: bf16[16,64], index: 0, kind: input, shape index: {}]
  %s1 = inlined_call_operand.vmem [shape: f32[1,64], index: 1, kind: input, shape index: {}]
  %s2 = inlined_call_operand.vmem [shape: f32[1,64], index: 2, kind: input, shape index: {}]
  %s3 = inlined_call_operand.vmem [shape: bf16[64,192], index: 3, kind: input, shape index: {}]
  %s4 = inlined_call_operand.vmem [shape: f32[1,192], index: 4, kind: input, shape index: {}]
  %s5 = inlined_call_operand.vmem [shape: bf16[16,192], index: 5, kind: output, shape index: {}]
  %s6 = sld [smem:[#allocation0]]
  $region30: #{esm2_forward.12} parent=0
    _
  %s8 = ssub.s32 1, %s6
  %s9 = scalar_select 0, %s8, %s6
  // Predicated region
  $region2: #{esm2_forward.12} parent=0 // pred_check
    _
  $region3: #{esm2_forward.12} parent=0 // pred_check_branch
    %11 = sbr.rel (0) target = $region5
  $region4: #{esm2_forward.12} parent=0 // pred_region
    _
  $region5: #{esm2_forward.12} parent=0 // pred_fallthru
    _
  // Predicated region
  $region6: #{esm2_forward.12} parent=0 // pred_check
    _
  $region7: #{esm2_forward.12} parent=0 // pred_check_branch
    %13 = sbr.rel (0) target = $region9
  $region8: #{esm2_forward.12} parent=0 // pred_region
    _
  $region9: #{esm2_forward.12} parent=0 // pred_fallthru
    _
  // Predicated region
  $region10: #{esm2_forward.12} parent=0 // pred_check
    _
  $region11: #{esm2_forward.12} parent=0 // pred_check_branch
    %15 = sbr.rel (0) target = $region13
  $region12: #{esm2_forward.12} parent=0 // pred_region
    _
  $region13: #{esm2_forward.12} parent=0 // pred_fallthru
    _
  // Predicated region
  $region14: #{esm2_forward.12} parent=0 // pred_check
    _
  $region15: #{esm2_forward.12} parent=0 // pred_check_branch
    %17 = sbr.rel (0) target = $region17
  $region16: #{esm2_forward.12} parent=0 // pred_region
    _
  $region17: #{esm2_forward.12} parent=0 // pred_fallthru
    _
  // Predicated region
  $region18: #{esm2_forward.12} parent=0 // pred_check
    _
  $region19: #{esm2_forward.12} parent=0 // pred_check_branch
    %19 = sbr.rel (0) target = $region21
  $region20: #{esm2_forward.12} parent=0 // pred_region
    _
  $region21: #{esm2_forward.12} parent=0 // pred_fallthru
    _
  %v21 = vld [vmem:[%s0] sm:$0xf]
  %v22 = vld [vmem:[%s0 + $0x4] sm:$0xf]
  %v23 = vunpack.c.l.bf16 %v21
  %v24 = vunpack.c.l.bf16 %v22
  %vm25 = vcmask 523264
  %v26 = vsel %vm25, %v23, 0.0
  %27 = vadd.xlane.f32.xlu0 %v26
  %v28 = vpop.xlane.xlu0 %27
  %v29 = vsel %vm25, %v24, 0.0
  %30 = vadd.xlane.f32.xlu0 %v29
  %v31 = vpop.xlane.xlu0 %30
  %v32 = vrcp.pop 64.0
  %v33 = vmul.f32 %v28, %v32
  %v34 = vmul.f32 %v31, %v32
  %v35 = vsub.f32 %v23, %v33
  %v36 = vsub.f32 %v24, %v34
  %v37 = vmul.f32 %v35, %v35
  %v38 = vmul.f32 %v36, %v36
  %v39 = vsel %vm25, %v37, 0.0
  %40 = vadd.xlane.f32.xlu0 %v39
  %v41 = vpop.xlane.xlu0 %40
  %v42 = vsel %vm25, %v38, 0.0
  %43 = vadd.xlane.f32.xlu0 %v42
  %v44 = vpop.xlane.xlu0 %43
  %v45 = vmul.f32 %v41, %v32
  %v46 = vmul.f32 %v44, %v32
  %v47 = vadd.f32 %v45, 1e-05
  %v48 = vadd.f32 %v46, 1e-05
  %v49 = vrsqrt.pop %v47
  %v50 = vrsqrt.pop %v48
  %v51 = vmul.f32 %v35, %v49
  %v52 = vmul.f32 %v36, %v50
  %v53 = vld [vmem:[%s1] sm:$0x1]
  %v55 = vlaneseq
  %v56 = vshrl.u32 %v55, 7
  %v57 = vsub.s32 0, %v56
  %v58 = vrot.slane %v53, %v57
  %v60 = vmul.f32 %v51, %v58
  %v61 = vmul.f32 %v52, %v58
  %v62 = vld [vmem:[%s2] sm:$0x1]
  %v64 = vlaneseq
  %v65 = vshrl.u32 %v64, 7
  %v66 = vsub.s32 0, %v65
  %v67 = vrot.slane %v62, %v66
  %v69 = vadd.f32 %v60, %v67
  %v70 = vadd.f32 %v61, %v67
  %v71 = vpack.c.bf16 %v70, %v69
  %v72 = vld [vmem:[%s3] sm:$0xff]
  %v73 = vld [vmem:[%s3 + $0x8] sm:$0xff]
  %v74 = vld [vmem:[%s3 + $0x10] sm:$0xff]
  %v75 = vld [vmem:[%s3 + $0x18] sm:$0xff]
  %v76 = vld [vmem:[%s3 + $0x20] sm:$0xff]
  %v77 = vld [vmem:[%s3 + $0x28] sm:$0xff]
  %v78 = vld [vmem:[%s3 + $0x30] sm:$0xff]
  %v79 = vld [vmem:[%s3 + $0x38] sm:$0xff]
  %v80 = vld [vmem:[%s4] sm:$0x3]
  %v82 = vlaneseq
  %v83 = vshrl.u32 %v82, 7
  %v84 = vsub.s32 0, %v83
  %v85 = vrot.slane %v80, %v84
  %v86 = vlaneseq
  %v87 = vshrl.u32 %v86, 7
  %v88 = vsub.s32 1, %v87
  %v89 = vrot.slane %v80, %v88
  %v100 = vunpack.c.l.b16 %v72
  %v101 = vunpack.c.h.b16 %v72
  %v102 = vunpack.c.l.b16 %v73
  %v103 = vunpack.c.h.b16 %v73
  %v104 = vunpack.c.l.b16 %v74
  %v105 = vunpack.c.h.b16 %v74
  %v106 = vunpack.c.l.b16 %v75
  %v107 = vunpack.c.h.b16 %v75
  %v108 = vunpack.c.l.b16 %v76
  %v109 = vunpack.c.h.b16 %v76
  %v110 = vunpack.c.l.b16 %v77
  %v111 = vunpack.c.h.b16 %v77
  %v112 = vunpack.c.l.b16 %v78
  %v113 = vunpack.c.h.b16 %v78
  %v114 = vunpack.c.l.b16 %v79
  %v115 = vunpack.c.h.b16 %v79
  %v116 = vpack.c.b16 %v102, %v100
  %v117 = vpack.c.b16 %v103, %v101
  %v118 = vpack.c.b16 %v106, %v104
  %v119 = vpack.c.b16 %v107, %v105
  %v120 = vpack.c.b16 %v110, %v108
  %v121 = vpack.c.b16 %v111, %v109
  %v122 = vpack.c.b16 %v114, %v112
  %v123 = vpack.c.b16 %v115, %v113
  %v133 = vsel %vm25, %v71, 0
  %135 = vmatprep.subr.bf16.mxu0 %v117
  %136 = vmatpush1.bf16.msra.mxu0 %v116
  %137 = vmatprep.subr.bf16.mxu0 %v119
  %138 = vmatpush1.bf16.msra.mxu0 %v118
  %139 = vmatprep.subr.bf16.mxu0 %v121
  %140 = vmatpush1.bf16.msra.mxu0 %v120
  %141 = vmatprep.subr.bf16.mxu0 %v123
  %142 = vmatpush1.bf16.msra.mxu0 %v122
  %143 = vmatprep.subr.bf16.mxu0 0
  %144 = vmatpush1.bf16.msra.mxu0 0
  %145 = vmatprep.subr.bf16.mxu0 0
  %146 = vmatpush1.bf16.msra.mxu0 0
  %147 = vmatprep.subr.bf16.mxu0 0
  %148 = vmatpush1.bf16.msra.mxu0 0
  %149 = vmatprep.subr.bf16.mxu0 0
  %150 = vmatpush1.bf16.msra.mxu0 0
  %151 = vmatprep.subr.bf16.mxu0 0
  %152 = vmatpush1.bf16.msra.mxu0 0
  %153 = vmatprep.subr.bf16.mxu0 0
  %154 = vmatpush1.bf16.msra.mxu0 0
  %155 = vmatprep.subr.bf16.mxu0 0
  %156 = vmatpush1.bf16.msra.mxu0 0
  %157 = vmatprep.subr.bf16.mxu0 0
  %158 = vmatpush1.bf16.msra.mxu0 0
  %159 = vmatprep.subr.bf16.mxu0 0
  %160 = vmatpush1.bf16.msra.mxu0 0
  %161 = vmatprep.subr.bf16.mxu0 0
  %162 = vmatpush1.bf16.msra.mxu0 0
  %163 = vmatprep.subr.bf16.mxu0 0
  %164 = vmatpush1.bf16.msra.mxu0 0
  %165 = vmatprep.subr.bf16.mxu0 0
  %166 = vmatpush1.bf16.msra.mxu0 0
  %167 = vmatprep.mubr.bf16.mxu0 0
  %168 = vmatmul.mubr.bf16.gmra.mrb[0].mxu0 %v133
  %v169 = vpop.f32.mrb[0].mxu0
  %v170 = vadd.f32 %v85, %v169
  %v171 = vpop.f32.mrb[0].mxu0
  %v172 = vadd.f32 %v89, %v171
  %v173 = vpop.f32.mrb[0].mxu0
  %v174 = vadd.f32 %v85, %v173
  %v175 = vpop.f32.mrb[0].mxu0
  %v176 = vadd.f32 %v89, %v175
  %177 = vdwg.mxu0
  %v178 = vpack.c.bf16 %v174, %v170
  %v179 = vpack.c.bf16 %v176, %v172
  %v182 = vunpack.c.l.b16 %v178
  %v183 = vunpack.c.l.b16 %v179
  %v184 = vunpack.c.h.b16 %v178
  %v185 = vunpack.c.h.b16 %v179
  %v186 = vpack.c.b16 %v183, %v182
  %v187 = vpack.c.b16 %v185, %v184
  %vm190 = vcmask 1043456
  %vm191 = vcmask 523268
  %vm192 = vmor %vm191, %vm190
  %193 = vst.msk [vmem:[%s5] sm:$0xff] %vm192, %v186
  %194 = vst.msk [vmem:[%s5 + $0x8] sm:$0xff] %vm192, %v187
  // Predicated region
  $region22: #{esm2_forward.12} parent=0 // pred_check
    _
  $region23: #{esm2_forward.12} parent=0 // pred_check_branch
    %196 = sbr.rel (0) target = $region25
  $region24: #{esm2_forward.12} parent=0 // pred_region
    _
  $region25: #{esm2_forward.12} parent=0 // pred_fallthru
    _
  // Predicated region
  $region26: #{esm2_forward.12} parent=0 // pred_check
    _
  $region27: #{esm2_forward.12} parent=0 // pred_check_branch
    %198 = sbr.rel (0) target = $region29
  $region28: #{esm2_forward.12} parent=0 // pred_region
    _
  $region29: #{esm2_forward.12} parent=0 // pred_fallthru
    _

// kernel: esm2_forward.14
$region0: #{esm2_forward.14}
  #allocation0 [shape = 'u32[]', space=smem, size = 0x4, offset = 0x4, fixed_abs, tag = 'smem constant byte address 0x4 - core index']
  #allocation1 [shape = 'u32[144,128]{1,0:T(1,128)}', space=vmem, size = 0x12000, scoped, tag = 'internal scratch']
  %s0 = inlined_call_operand.vmem [shape: bf16[16,64], index: 0, kind: input, shape index: {}]
  %s1 = inlined_call_operand.vmem [shape: bf16[64,64], index: 1, kind: input, shape index: {}]
  %s2 = inlined_call_operand.vmem [shape: f32[1,64], index: 2, kind: input, shape index: {}]
  %s3 = inlined_call_operand.vmem [shape: bf16[16,64], index: 3, kind: input, shape index: {}]
  %s4 = inlined_call_operand.vmem [shape: bf16[16,64], index: 4, kind: output, shape index: {}]
  %s5 = sld [smem:[#allocation0]]
  $region26: #{esm2_forward.14} parent=0
    _
  %s7 = ssub.s32 1, %s5
  %s8 = scalar_select 0, %s7, %s5
  // Predicated region
  $region2: #{esm2_forward.14} parent=0 // pred_check
    _
  $region3: #{esm2_forward.14} parent=0 // pred_check_branch
    %10 = sbr.rel (0) target = $region5
  $region4: #{esm2_forward.14} parent=0 // pred_region
    _
  $region5: #{esm2_forward.14} parent=0 // pred_fallthru
    _
  // Predicated region
  $region6: #{esm2_forward.14} parent=0 // pred_check
    _
  $region7: #{esm2_forward.14} parent=0 // pred_check_branch
    %12 = sbr.rel (0) target = $region9
  $region8: #{esm2_forward.14} parent=0 // pred_region
    _
  $region9: #{esm2_forward.14} parent=0 // pred_fallthru
    _
  // Predicated region
  $region10: #{esm2_forward.14} parent=0 // pred_check
    _
  $region11: #{esm2_forward.14} parent=0 // pred_check_branch
    %14 = sbr.rel (0) target = $region13
  $region12: #{esm2_forward.14} parent=0 // pred_region
    _
  $region13: #{esm2_forward.14} parent=0 // pred_fallthru
    _
  // Predicated region
  $region14: #{esm2_forward.14} parent=0 // pred_check
    _
  $region15: #{esm2_forward.14} parent=0 // pred_check_branch
    %16 = sbr.rel (0) target = $region17
  $region16: #{esm2_forward.14} parent=0 // pred_region
    _
  $region17: #{esm2_forward.14} parent=0 // pred_fallthru
    _
  %v18 = vld [vmem:[%s0] sm:$0xf]
  %v19 = vld [vmem:[%s0 + $0x4] sm:$0xf]
  %v20 = vld [vmem:[%s1] sm:$0xf]
  %v21 = vld [vmem:[%s1 + $0x4] sm:$0xf]
  %v22 = vld [vmem:[%s1 + $0x8] sm:$0xf]
  %v23 = vld [vmem:[%s1 + $0xc] sm:$0xf]
  %v24 = vld [vmem:[%s1 + $0x10] sm:$0xf]
  %v25 = vld [vmem:[%s1 + $0x14] sm:$0xf]
  %v26 = vld [vmem:[%s1 + $0x18] sm:$0xf]
  %v27 = vld [vmem:[%s1 + $0x1c] sm:$0xf]
  %v28 = vld [vmem:[%s2] sm:$0x1]
  %v30 = vlaneseq
  %v31 = vshrl.u32 %v30, 7
  %v32 = vsub.s32 0, %v31
  %v33 = vrot.slane %v28, %v32
  %v37 = vunpack.c.l.b16 %v18
  %v38 = vunpack.c.l.b16 %v19
  %v39 = vpack.c.b16 %v38, %v37
  %v48 = vunpack.c.l.b16 %v20
  %v49 = vunpack.c.l.b16 %v21
  %v50 = vunpack.c.l.b16 %v22
  %v51 = vunpack.c.l.b16 %v23
  %v52 = vunpack.c.l.b16 %v24
  %v53 = vunpack.c.l.b16 %v25
  %v54 = vunpack.c.l.b16 %v26
  %v55 = vunpack.c.l.b16 %v27
  %v56 = vpack.c.b16 %v49, %v48
  %v57 = vpack.c.b16 %v51, %v50
  %v58 = vpack.c.b16 %v53, %v52
  %v59 = vpack.c.b16 %v55, %v54
  %vm64 = vcmask 523264
  %v66 = vsel %vm64, %v39, 0
  %68 = vmatprep.subr.bf16.mxu0 0
  %69 = vmatpush1.bf16.msra.mxu0 %v56
  %70 = vmatprep.subr.bf16.mxu0 0
  %71 = vmatpush1.bf16.msra.mxu0 %v57
  %72 = vmatprep.subr.bf16.mxu0 0
  %73 = vmatpush1.bf16.msra.mxu0 %v58
  %74 = vmatprep.subr.bf16.mxu0 0
  %75 = vmatpush1.bf16.msra.mxu0 %v59
  %76 = vmatprep.subr.bf16.mxu0 0
  %77 = vmatpush1.bf16.msra.mxu0 0
  %78 = vmatprep.subr.bf16.mxu0 0
  %79 = vmatpush1.bf16.msra.mxu0 0
  %80 = vmatprep.subr.bf16.mxu0 0
  %81 = vmatpush1.bf16.msra.mxu0 0
  %82 = vmatprep.subr.bf16.mxu0 0
  %83 = vmatpush1.bf16.msra.mxu0 0
  %84 = vmatprep.subr.bf16.mxu0 0
  %85 = vmatpush1.bf16.msra.mxu0 0
  %86 = vmatprep.subr.bf16.mxu0 0
  %87 = vmatpush1.bf16.msra.mxu0 0
  %88 = vmatprep.subr.bf16.mxu0 0
  %89 = vmatpush1.bf16.msra.mxu0 0
  %90 = vmatprep.subr.bf16.mxu0 0
  %91 = vmatpush1.bf16.msra.mxu0 0
  %92 = vmatprep.subr.bf16.mxu0 0
  %93 = vmatpush1.bf16.msra.mxu0 0
  %94 = vmatprep.subr.bf16.mxu0 0
  %95 = vmatpush1.bf16.msra.mxu0 0
  %96 = vmatprep.subr.bf16.mxu0 0
  %97 = vmatpush1.bf16.msra.mxu0 0
  %98 = vmatprep.subr.bf16.mxu0 0
  %99 = vmatpush1.bf16.msra.mxu0 0
  %100 = vmatprep.mubr.bf16.mxu0 0
  %101 = vmatmul.mubr.bf16.gmra.mrb[0].mxu0 %v66
  %v102 = vpop.f32.mrb[0].mxu0
  %v103 = vadd.f32 %v33, %v102
  %v104 = vpop.f32.mrb[0].mxu0
  %v105 = vpop.f32.mrb[0].mxu0
  %v106 = vadd.f32 %v33, %v105
  %v107 = vpop.f32.mrb[0].mxu0
  %108 = vdwg.mxu0
  %v109 = vld [vmem:[%s3] sm:$0xf]
  %v110 = vld [vmem:[%s3 + $0x4] sm:$0xf]
  %v111 = vunpack.c.l.bf16 %v109
  %v112 = vunpack.c.l.bf16 %v110
  %v113 = vadd.f32 %v103, %v111
  %v114 = vadd.f32 %v106, %v112
  %v115 = vpack.c.bf16 %v114, %v113
  %v117 = vunpack.c.l.b16 %v115
  %v118 = vunpack.c.h.b16 %v115
  %v119 = vpack.c.b16 %v117, %v117
  %v120 = vpack.c.b16 %v118, %v118
  %vm123 = vcmask 519168
  %124 = vst.msk [vmem:[%s4] sm:$0xf] %vm123, %v119
  %125 = vst.msk [vmem:[%s4 + $0x4] sm:$0xf] %vm123, %v120
  // Predicated region
  $region18: #{esm2_forward.14} parent=0 // pred_check
    _
  $region19: #{esm2_forward.14} parent=0 // pred_check_branch
    %127 = sbr.rel (0) target = $region21
  $region20: #{esm2_forward.14} parent=0 // pred_region
    _
  $region21: #{esm2_forward.14} parent=0 // pred_fallthru
    _
  // Predicated region
  $region22: #{esm2_forward.14} parent=0 // pred_check
    _
  $region23: #{esm2_forward.14} parent=0 // pred_check_branch
    %129 = sbr.rel (0) target = $region25
  $region24: #{esm2_forward.14} parent=0 // pred_region
    _
  $region25: #{esm2_forward.14} parent=0 // pred_fallthru
    _

// kernel: esm2_forward.13
$region0: #{esm2_forward.13}
  #allocation0 [shape = 'u32[]', space=smem, size = 0x4, offset = 0x4, fixed_abs, tag = 'smem constant byte address 0x4 - core index']
  #allocation1 [shape = 'u32[144,128]{1,0:T(1,128)}', space=vmem, size = 0x12000, scoped, tag = 'internal scratch']
  %s0 = inlined_call_operand.vmem [shape: bf16[2,4,8,16], index: 0, kind: input, shape index: {}]
  %s1 = inlined_call_operand.vmem [shape: bf16[2,4,8,16], index: 1, kind: input, shape index: {}]
  %s2 = inlined_call_operand.vmem [shape: bf16[2,4,8,16], index: 2, kind: input, shape index: {}]
  %s3 = inlined_call_operand.vmem [shape: f32[2,1,8], index: 3, kind: input, shape index: {}]
  %s4 = inlined_call_operand.vmem [shape: bf16[2,4,8,16], index: 4, kind: output, shape index: {}]
  %s5 = sld [smem:[#allocation0]]
  $region49: #{esm2_forward.13} parent=0
    _
  %s7 = ssub.s32 1, %s5
  %s8 = scalar_select 0, %s7, %s5
  loop: start=0, step=1, limit=4
  $region2: #{esm2_forward.13} parent=0 // loop_pre_header
    _
  $region3: #{esm2_forward.13} parent=0 // loop_header
    %s10 = sphi 0, %s14
    %p11 = scmp.ge.s32.totalorder %s10, 4
    %s20 = sphi 0, %s22
    %s23 = sphi 0, %s20
    %s24 = sphi 0, %s23
    %s40 = sphi 0, %s24
    %s46 = sphi 0, %s48
    %s49 = sphi 0, %s46
    %s50 = sphi 0, %s49
    %s66 = sphi 0, %s50
    %s72 = sphi 0, %s74
    %s75 = sphi 0, %s72
    %s76 = sphi 0, %s75
    %s92 = sphi 0, %s76
    %s98 = sphi 0, %s100
    %s101 = sphi 0, %s98
    %s102 = sphi 0, %s101
    %s118 = sphi 0, %s102
    %s124 = sphi 0, %s126
    %s127 = sphi 0, %s124
    %s128 = sphi 0, %s127
    %s144 = sphi 0, %s128
  $region4: #{esm2_forward.13} parent=0 // loop_header_branch
    %13 = sbr.rel (%p11) target = $region8
  $region5: #{esm2_forward.13} parent=0 // loop_body
    %s15 = ssub.s32 %s10, 1
    %s16 = ssub.s32 %s10, 2
    %s17 = sadd.s32 %s10, 1
    %s18 = ssub.s32 %s10, %s17
    %p19 = scmp.eq.s32.totalorder %s18, 0
    %s21 = sadd.s32 %s20, 1
    %s22 = scalar_select %p19, %s20, %s21
    %p25 = pneg %p19
    %p26 = scmp.eq.s32.totalorder %s10, 1
    %p27 = por %p25, %p26
    %p28 = scmp.ne.s32.totalorder %s20, %s23
    %p29 = scmp.eq.s32.totalorder %s10, 0
    %p30 = por %p28, %p29
    %p31 = scmp.ne.s32.totalorder %s20, %s23
    %p32 = scmp.eq.s32.totalorder %s15, 1
    %p33 = por %p31, %p32
    %p34 = scmp.ne.s32.totalorder %s23, %s24
    %p35 = scmp.eq.s32.totalorder %s15, 0
    %p36 = por %p34, %p35
    %p37 = scmp.ne.s32.totalorder %s23, %s24
    %p38 = scmp.eq.s32.totalorder %s16, 1
    %p39 = por %p37, %p38
    %p41 = scmp.ne.s32.totalorder %s24, %s40
    %p42 = scmp.eq.s32.totalorder %s16, 0
    %p43 = por %p41, %p42
    %s44 = ssub.s32 %s10, %s17
    %p45 = scmp.eq.s32.totalorder %s44, 0
    %s47 = sadd.s32 %s46, 1
    %s48 = scalar_select %p45, %s46, %s47
    %p51 = pneg %p45
    %p52 = scmp.eq.s32.totalorder %s10, 1
    %p53 = por %p51, %p52
    %p54 = scmp.ne.s32.totalorder %s46, %s49
    %p55 = scmp.eq.s32.totalorder %s10, 0
    %p56 = por %p54, %p55
    %p57 = scmp.ne.s32.totalorder %s46, %s49
    %p58 = scmp.eq.s32.totalorder %s15, 1
    %p59 = por %p57, %p58
    %p60 = scmp.ne.s32.totalorder %s49, %s50
    %p61 = scmp.eq.s32.totalorder %s15, 0
    %p62 = por %p60, %p61
    %p63 = scmp.ne.s32.totalorder %s49, %s50
    %p64 = scmp.eq.s32.totalorder %s16, 1
    %p65 = por %p63, %p64
    %p67 = scmp.ne.s32.totalorder %s50, %s66
    %p68 = scmp.eq.s32.totalorder %s16, 0
    %p69 = por %p67, %p68
    %s70 = ssub.s32 %s10, %s17
    %p71 = scmp.eq.s32.totalorder %s70, 0
    %s73 = sadd.s32 %s72, 1
    %s74 = scalar_select %p71, %s72, %s73
    %p77 = pneg %p71
    %p78 = scmp.eq.s32.totalorder %s10, 1
    %p79 = por %p77, %p78
    %p80 = scmp.ne.s32.totalorder %s72, %s75
    %p81 = scmp.eq.s32.totalorder %s10, 0
    %p82 = por %p80, %p81
    %p83 = scmp.ne.s32.totalorder %s72, %s75
    %p84 = scmp.eq.s32.totalorder %s15, 1
    %p85 = por %p83, %p84
    %p86 = scmp.ne.s32.totalorder %s75, %s76
    %p87 = scmp.eq.s32.totalorder %s15, 0
    %p88 = por %p86, %p87
    %p89 = scmp.ne.s32.totalorder %s75, %s76
    %p90 = scmp.eq.s32.totalorder %s16, 1
    %p91 = por %p89, %p90
    %p93 = scmp.ne.s32.totalorder %s76, %s92
    %p94 = scmp.eq.s32.totalorder %s16, 0
    %p95 = por %p93, %p94
    %s96 = ssub.s32 %s10, %s17
    %p97 = scmp.eq.s32.totalorder %s96, 0
    %s99 = sadd.s32 %s98, 1
    %s100 = scalar_select %p97, %s98, %s99
    %p103 = pneg %p97
    %p104 = scmp.eq.s32.totalorder %s10, 1
    %p105 = por %p103, %p104
    %p106 = scmp.ne.s32.totalorder %s98, %s101
    %p107 = scmp.eq.s32.totalorder %s10, 0
    %p108 = por %p106, %p107
    %p109 = scmp.ne.s32.totalorder %s98, %s101
    %p110 = scmp.eq.s32.totalorder %s15, 1
    %p111 = por %p109, %p110
    %p112 = scmp.ne.s32.totalorder %s101, %s102
    %p113 = scmp.eq.s32.totalorder %s15, 0
    %p114 = por %p112, %p113
    %p115 = scmp.ne.s32.totalorder %s101, %s102
    %p116 = scmp.eq.s32.totalorder %s16, 1
    %p117 = por %p115, %p116
    %p119 = scmp.ne.s32.totalorder %s102, %s118
    %p120 = scmp.eq.s32.totalorder %s16, 0
    %p121 = por %p119, %p120
    %s122 = ssub.s32 %s10, %s17
    %p123 = scmp.eq.s32.totalorder %s122, 0
    %s125 = sadd.s32 %s124, 1
    %s126 = scalar_select %p123, %s124, %s125
    %p129 = pneg %p123
    %p130 = scmp.eq.s32.totalorder %s10, 1
    %p131 = por %p129, %p130
    %p132 = scmp.ne.s32.totalorder %s124, %s127
    %p133 = scmp.eq.s32.totalorder %s10, 0
    %p134 = por %p132, %p133
    %p135 = scmp.ne.s32.totalorder %s124, %s127
    %p136 = scmp.eq.s32.totalorder %s15, 1
    %p137 = por %p135, %p136
    %p138 = scmp.ne.s32.totalorder %s127, %s128
    %p139 = scmp.eq.s32.totalorder %s15, 0
    %p140 = por %p138, %p139
    %p141 = scmp.ne.s32.totalorder %s127, %s128
    %p142 = scmp.eq.s32.totalorder %s16, 1
    %p143 = por %p141, %p142
    %p145 = scmp.ne.s32.totalorder %s128, %s144
    %p146 = scmp.eq.s32.totalorder %s16, 0
    %p147 = por %p145, %p146
    %p148 = scmp.le.s32.totalorder 1, %s10
    %p149 = scmp.lt.s32.totalorder %s10, 3
    %p150 = pnand %p148, %p149
    %p151 = pneg %p150
    // Predicated region
    $region9: #{esm2_forward.13} parent=5 // pred_check
      _
    $region10: #{esm2_forward.13} parent=5 // pred_check_branch
      %153 = sbr.rel (%p150) target = $region12
    $region11: #{esm2_forward.13} parent=5 // pred_region
      %s154 = ssub.s32 %s10, 1
    $region12: #{esm2_forward.13} parent=5 // pred_fallthru
      _
    %p155 = scmp.lt.s32.totalorder %s10, 2
    // Predicated region
    $region13: #{esm2_forward.13} parent=5 // pred_check
      %p156 = pneg %p155
    $region14: #{esm2_forward.13} parent=5 // pred_check_branch
      %158 = sbr.rel (%p156) target = $region16
    $region15: #{esm2_forward.13} parent=5 // pred_region
      // Predicated region
      $region17: #{esm2_forward.13} parent=15 // pred_check
        %p159 = pneg %p30
      $region18: #{esm2_forward.13} parent=15 // pred_check_branch
        %161 = sbr.rel (%p159) target = $region20
      $region19: #{esm2_forward.13} parent=15 // pred_region
        %p162 = scmp.lt.s32.totalorder %s10, 1
        %s163 = scalar_select %p162, %s10, 1
        %s164 = smul.addr %s163, 4
        %s165 = smul.addr %s164, 4
        %s166 = scalar_lea.vmem %s0, %s165
      $region20: #{esm2_forward.13} parent=15 // pred_fallthru
        _
      // Predicated region
      $region21: #{esm2_forward.13} parent=15 // pred_check
        %p167 = pneg %p56
      $region22: #{esm2_forward.13} parent=15 // pred_check_branch
        %169 = sbr.rel (%p167) target = $region24
      $region23: #{esm2_forward.13} parent=15 // pred_region
        %p170 = scmp.lt.s32.totalorder %s10, 1
        %s171 = scalar_select %p170, %s10, 1
        %s172 = smul.addr %s171, 4
        %s173 = smul.addr %s172, 4
        %s174 = scalar_lea.vmem %s1, %s173
      $region24: #{esm2_forward.13} parent=15 // pred_fallthru
        _
      // Predicated region
      $region25: #{esm2_forward.13} parent=15 // pred_check
        %p175 = pneg %p82
      $region26: #{esm2_forward.13} parent=15 // pred_check_branch
        %177 = sbr.rel (%p175) target = $region28
      $region27: #{esm2_forward.13} parent=15 // pred_region
        %p178 = scmp.lt.s32.totalorder %s10, 1
        %s179 = scalar_select %p178, %s10, 1
        %s180 = smul.addr %s179, 4
        %s181 = smul.addr %s180, 4
        %s182 = scalar_lea.vmem %s2, %s181
      $region28: #{esm2_forward.13} parent=15 // pred_fallthru
        _
      // Predicated region
      $region29: #{esm2_forward.13} parent=15 // pred_check
        %p183 = pneg %p108
      $region30: #{esm2_forward.13} parent=15 // pred_check_branch
        %185 = sbr.rel (%p183) target = $region32
      $region31: #{esm2_forward.13} parent=15 // pred_region
        %p186 = scmp.lt.s32.totalorder %s10, 1
        %s187 = scalar_select %p186, %s10, 1
        %s188 = scalar_lea.vmem %s3, %s187
      $region32: #{esm2_forward.13} parent=15 // pred_fallthru
        _
    $region16: #{esm2_forward.13} parent=5 // pred_fallthru
      _
    %p189 = scmp.le.s32.totalorder 1, %s10
    %p190 = scmp.lt.s32.totalorder %s10, 3
    %p191 = pnand %p189, %p190
    %p192 = pneg %p191
    // Predicated region
    $region33: #{esm2_forward.13} parent=5 // pred_check
      _
    $region34: #{esm2_forward.13} parent=5 // pred_check_branch
      %194 = sbr.rel (%p191) target = $region36
    $region35: #{esm2_forward.13} parent=5 // pred_region
      %s195 = ssub.s32 %s10, 1
      %p196 = scmp.lt.s32.totalorder %s15, 1
      %s197 = scalar_select %p196, %s15, 1
      %s198 = smul.addr %s197, 4
      %s199 = smul.addr %s198, 4
      %s200 = scalar_lea.vmem %s0, %s199
      %p201 = pneg %p36
      %p202 = pneg %p33
      %p203 = scmp.lt.s32.totalorder %s15, 1
      %s204 = scalar_select %p203, %s15, 1
      %s205 = smul.addr %s204, 4
      %s206 = smul.addr %s205, 4
      %s207 = scalar_lea.vmem %s1, %s206
      %p208 = pneg %p62
      %p209 = pneg %p59
      %p210 = scmp.lt.s32.totalorder %s15, 1
      %s211 = scalar_select %p210, %s15, 1
      %s212 = smul.addr %s211, 4
      %s213 = smul.addr %s212, 4
      %s214 = scalar_lea.vmem %s2, %s213
      %p215 = pneg %p88
      %p216 = pneg %p85
      %p217 = scmp.lt.s32.totalorder %s15, 1
      %s218 = scalar_select %p217, %s15, 1
      %s219 = scalar_lea.vmem %s3, %s218
      %p220 = pneg %p114
      %p221 = pneg %p111
      %p222 = pneg %p140
      %p223 = pneg %p137
      %p224 = scmp.lt.s32.totalorder %s15, 1
      %s225 = scalar_select %p224, %s15, 1
      %s226 = smul.addr %s225, 4
      %s227 = smul.addr %s226, 4
      %s228 = scalar_lea.vmem %s4, %s227
      %p229 = scmp.lt.s32.totalorder %s15, 1
      %s230 = scalar_select %p229, %s15, 1
      %s231 = smul.addr %s230, 4
      %s232 = smul.addr %s231, 4
      %s233 = scalar_lea.vmem %s0, %s232
      %p234 = scmp.lt.s32.totalorder %s15, 1
      %s235 = scalar_select %p234, %s15, 1
      %s236 = smul.addr %s235, 4
      %s237 = smul.addr %s236, 4
      %s238 = scalar_lea.vmem %s1, %s237
      %p239 = scmp.lt.s32.totalorder %s15, 1
      %s240 = scalar_select %p239, %s15, 1
      %s241 = smul.addr %s240, 4
      %s242 = smul.addr %s241, 4
      %s243 = scalar_lea.vmem %s2, %s242
      %p244 = scmp.lt.s32.totalorder %s15, 1
      %s245 = scalar_select %p244, %s15, 1
      %s246 = scalar_lea.vmem %s3, %s245
      %p247 = scmp.lt.s32.totalorder %s15, 1
      %s248 = scalar_select %p247, %s15, 1
      %s249 = smul.addr %s248, 4
      %s250 = smul.addr %s249, 4
      %s251 = scalar_lea.vmem %s4, %s250
      %v253 = vld [vmem:[%s233] sm:$0xf]
      %v254 = vld [vmem:[%s233 + $0x4] sm:$0xf]
      %v255 = vld [vmem:[%s233 + $0x8] sm:$0xf]
      %v256 = vld [vmem:[%s233 + $0xc] sm:$0xf]
      %v257 = vld [vmem:[%s238] sm:$0xf]
      %v258 = vld [vmem:[%s238 + $0x4] sm:$0xf]
      %v259 = vld [vmem:[%s238 + $0x8] sm:$0xf]
      %v260 = vld [vmem:[%s238 + $0xc] sm:$0xf]
      %v261 = vld [vmem:[%s243] sm:$0xf]
      %v262 = vld [vmem:[%s243 + $0x4] sm:$0xf]
      %v263 = vld [vmem:[%s243 + $0x8] sm:$0xf]
      %v264 = vld [vmem:[%s243 + $0xc] sm:$0xf]
      %v265 = vld [vmem:[%s246] sm:$0x1]
      %v267 = vlaneseq
      %v268 = vshrl.u32 %v267, 7
      %v269 = vsub.s32 0, %v268
      %v270 = vrot.slane %v265, %v269
      %vm272 = vcmask 130048
      %v274 = vsel %vm272, %v253, 0
      %v277 = vsel %vm272, %v257, 0
      %279 = vmatprep.subr.bf16.mxu0 0
      %280 = vmatpush1.bf16.xpose.msra.mxu0 %v277
      %281 = vmatprep.subr.bf16.mxu0 0
      %282 = vmatpush1.bf16.xpose.msra.mxu0 0
      %283 = vmatprep.subr.bf16.mxu0 0
      %284 = vmatpush1.bf16.xpose.msra.mxu0 0
      %285 = vmatprep.subr.bf16.mxu0 0
      %286 = vmatpush1.bf16.xpose.msra.mxu0 0
      %287 = vmatprep.subr.bf16.mxu0 0
      %288 = vmatpush1.bf16.xpose.msra.mxu0 0
      %289 = vmatprep.subr.bf16.mxu0 0
      %290 = vmatpush1.bf16.xpose.msra.mxu0 0
      %291 = vmatprep.subr.bf16.mxu0 0
      %292 = vmatpush1.bf16.xpose.msra.mxu0 0
      %293 = vmatprep.subr.bf16.mxu0 0
      %294 = vmatpush1.bf16.xpose.msra.mxu0 0
      %295 = vmatprep.subr.bf16.mxu0 0
      %296 = vmatpush1.bf16.xpose.msra.mxu0 0
      %297 = vmatprep.subr.bf16.mxu0 0
      %298 = vmatpush1.bf16.xpose.msra.mxu0 0
      %299 = vmatprep.subr.bf16.mxu0 0
      %300 = vmatpush1.bf16.xpose.msra.mxu0 0
      %301 = vmatprep.subr.bf16.mxu0 0
      %302 = vmatpush1.bf16.xpose.msra.mxu0 0
      %303 = vmatprep.subr.bf16.mxu0 0
      %304 = vmatpush1.bf16.xpose.msra.mxu0 0
      %305 = vmatprep.subr.bf16.mxu0 0
      %306 = vmatpush1.bf16.xpose.msra.mxu0 0
      %307 = vmatprep.subr.bf16.mxu0 0
      %308 = vmatpush1.bf16.xpose.msra.mxu0 0
      %309 = vmatprep.subr.bf16.mxu0 0
      %310 = vmatpush1.bf16.xpose.msra.mxu0 0
      %311 = vmatprep.mubr.bf16.mxu0 0
      %312 = vmatmul.mubr.bf16.gmra.mrb[0].mxu0 %v274
      %v313 = vpop.f32.mrb[0].mxu0
      %v314 = vadd.f32 %v270, %v313
      %v315 = vpop.f32.mrb[0].mxu0
      %v316 = vpop.f32.mrb[0].mxu0
      %v317 = vpop.f32.mrb[0].mxu0
      %318 = vdwg.mxu0
      %v320 = vsel %vm272, %v254, 0
      %v323 = vsel %vm272, %v258, 0
      %325 = vmatprep.subr.bf16.mxu0 0
      %326 = vmatpush1.bf16.xpose.msra.mxu0 %v323
      %327 = vmatprep.subr.bf16.mxu0 0
      %328 = vmatpush1.bf16.xpose.msra.mxu0 0
      %329 = vmatprep.subr.bf16.mxu0 0
      %330 = vmatpush1.bf16.xpose.msra.mxu0 0
      %331 = vmatprep.subr.bf16.mxu0 0
      %332 = vmatpush1.bf16.xpose.msra.mxu0 0
      %333 = vmatprep.subr.bf16.mxu0 0
      %334 = vmatpush1.bf16.xpose.msra.mxu0 0
      %335 = vmatprep.subr.bf16.mxu0 0
      %336 = vmatpush1.bf16.xpose.msra.mxu0 0
      %337 = vmatprep.subr.bf16.mxu0 0
      %338 = vmatpush1.bf16.xpose.msra.mxu0 0
      %339 = vmatprep.subr.bf16.mxu0 0
      %340 = vmatpush1.bf16.xpose.msra.mxu0 0
      %341 = vmatprep.subr.bf16.mxu0 0
      %342 = vmatpush1.bf16.xpose.msra.mxu0 0
      %343 = vmatprep.subr.bf16.mxu0 0
      %344 = vmatpush1.bf16.xpose.msra.mxu0 0
      %345 = vmatprep.subr.bf16.mxu0 0
      %346 = vmatpush1.bf16.xpose.msra.mxu0 0
      %347 = vmatprep.subr.bf16.mxu0 0
      %348 = vmatpush1.bf16.xpose.msra.mxu0 0
      %349 = vmatprep.subr.bf16.mxu0 0
      %350 = vmatpush1.bf16.xpose.msra.mxu0 0
      %351 = vmatprep.subr.bf16.mxu0 0
      %352 = vmatpush1.bf16.xpose.msra.mxu0 0
      %353 = vmatprep.subr.bf16.mxu0 0
      %354 = vmatpush1.bf16.xpose.msra.mxu0 0
      %355 = vmatprep.subr.bf16.mxu0 0
      %356 = vmatpush1.bf16.xpose.msra.mxu0 0
      %357 = vmatprep.mubr.bf16.mxu0 0
      %358 = vmatmul.mubr.bf16.gmra.mrb[0].mxu0 %v320
      %v359 = vpop.f32.mrb[0].mxu0
      %v360 = vadd.f32 %v270, %v359
      %v361 = vpop.f32.mrb[0].mxu0
      %v362 = vpop.f32.mrb[0].mxu0
      %v363 = vpop.f32.mrb[0].mxu0
      %364 = vdwg.mxu0
      %v366 = vsel %vm272, %v255, 0
      %v369 = vsel %vm272, %v259, 0
      %371 = vmatprep.subr.bf16.mxu0 0
      %372 = vmatpush1.bf16.xpose.msra.mxu0 %v369
      %373 = vmatprep.subr.bf16.mxu0 0
      %374 = vmatpush1.bf16.xpose.msra.mxu0 0
      %375 = vmatprep.subr.bf16.mxu0 0
      %376 = vmatpush1.bf16.xpose.msra.mxu0 0
      %377 = vmatprep.subr.bf16.mxu0 0
      %378 = vmatpush1.bf16.xpose.msra.mxu0 0
      %379 = vmatprep.subr.bf16.mxu0 0
      %380 = vmatpush1.bf16.xpose.msra.mxu0 0
      %381 = vmatprep.subr.bf16.mxu0 0
      %382 = vmatpush1.bf16.xpose.msra.mxu0 0
      %383 = vmatprep.subr.bf16.mxu0 0
      %384 = vmatpush1.bf16.xpose.msra.mxu0 0
      %385 = vmatprep.subr.bf16.mxu0 0
      %386 = vmatpush1.bf16.xpose.msra.mxu0 0
      %387 = vmatprep.subr.bf16.mxu0 0
      %388 = vmatpush1.bf16.xpose.msra.mxu0 0
      %389 = vmatprep.subr.bf16.mxu0 0
      %390 = vmatpush1.bf16.xpose.msra.mxu0 0
      %391 = vmatprep.subr.bf16.mxu0 0
      %392 = vmatpush1.bf16.xpose.msra.mxu0 0
      %393 = vmatprep.subr.bf16.mxu0 0
      %394 = vmatpush1.bf16.xpose.msra.mxu0 0
      %395 = vmatprep.subr.bf16.mxu0 0
      %396 = vmatpush1.bf16.xpose.msra.mxu0 0
      %397 = vmatprep.subr.bf16.mxu0 0
      %398 = vmatpush1.bf16.xpose.msra.mxu0 0
      %399 = vmatprep.subr.bf16.mxu0 0
      %400 = vmatpush1.bf16.xpose.msra.mxu0 0
      %401 = vmatprep.subr.bf16.mxu0 0
      %402 = vmatpush1.bf16.xpose.msra.mxu0 0
      %403 = vmatprep.mubr.bf16.mxu0 0
      %404 = vmatmul.mubr.bf16.gmra.mrb[0].mxu0 %v366
      %v405 = vpop.f32.mrb[0].mxu0
      %v406 = vadd.f32 %v270, %v405
      %v407 = vpop.f32.mrb[0].mxu0
      %v408 = vpop.f32.mrb[0].mxu0
      %v409 = vpop.f32.mrb[0].mxu0
      %410 = vdwg.mxu0
      %v412 = vsel %vm272, %v256, 0
      %v415 = vsel %vm272, %v260, 0
      %417 = vmatprep.subr.bf16.mxu0 0
      %418 = vmatpush1.bf16.xpose.msra.mxu0 %v415
      %419 = vmatprep.subr.bf16.mxu0 0
      %420 = vmatpush1.bf16.xpose.msra.mxu0 0
      %421 = vmatprep.subr.bf16.mxu0 0
      %422 = vmatpush1.bf16.xpose.msra.mxu0 0
      %423 = vmatprep.subr.bf16.mxu0 0
      %424 = vmatpush1.bf16.xpose.msra.mxu0 0
      %425 = vmatprep.subr.bf16.mxu0 0
      %426 = vmatpush1.bf16.xpose.msra.mxu0 0
      %427 = vmatprep.subr.bf16.mxu0 0
      %428 = vmatpush1.bf16.xpose.msra.mxu0 0
      %429 = vmatprep.subr.bf16.mxu0 0
      %430 = vmatpush1.bf16.xpose.msra.mxu0 0
      %431 = vmatprep.subr.bf16.mxu0 0
      %432 = vmatpush1.bf16.xpose.msra.mxu0 0
      %433 = vmatprep.subr.bf16.mxu0 0
      %434 = vmatpush1.bf16.xpose.msra.mxu0 0
      %435 = vmatprep.subr.bf16.mxu0 0
      %436 = vmatpush1.bf16.xpose.msra.mxu0 0
      %437 = vmatprep.subr.bf16.mxu0 0
      %438 = vmatpush1.bf16.xpose.msra.mxu0 0
      %439 = vmatprep.subr.bf16.mxu0 0
      %440 = vmatpush1.bf16.xpose.msra.mxu0 0
      %441 = vmatprep.subr.bf16.mxu0 0
      %442 = vmatpush1.bf16.xpose.msra.mxu0 0
      %443 = vmatprep.subr.bf16.mxu0 0
      %444 = vmatpush1.bf16.xpose.msra.mxu0 0
      %445 = vmatprep.subr.bf16.mxu0 0
      %446 = vmatpush1.bf16.xpose.msra.mxu0 0
      %447 = vmatprep.subr.bf16.mxu0 0
      %448 = vmatpush1.bf16.xpose.msra.mxu0 0
      %449 = vmatprep.mubr.bf16.mxu0 0
      %450 = vmatmul.mubr.bf16.gmra.mrb[0].mxu0 %v412
      %v451 = vpop.f32.mrb[0].mxu0
      %v452 = vadd.f32 %v270, %v451
      %v453 = vpop.f32.mrb[0].mxu0
      %v454 = vpop.f32.mrb[0].mxu0
      %v455 = vpop.f32.mrb[0].mxu0
      %456 = vdwg.mxu0
      %vm457 = vcmask 64512
      %v458 = vsel %vm457, %v314, -inf
      %459 = vmax.xlane.f32.xlu0 %v458
      %v460 = vpop.xlane.xlu0 %459
      %v461 = vsel %vm457, %v360, -inf
      %462 = vmax.xlane.f32.xlu0 %v461
      %v463 = vpop.xlane.xlu0 %462
      %v464 = vsel %vm457, %v406, -inf
      %465 = vmax.xlane.f32.xlu0 %v464
      %v466 = vpop.xlane.xlu0 %465
      %v467 = vsel %vm457, %v452, -inf
      %468 = vmax.xlane.f32.xlu0 %v467
      %v469 = vpop.xlane.xlu0 %468
      %v470 = vsub.f32 %v314, %v460
      %v471 = vsub.f32 %v360, %v463
      %v472 = vsub.f32 %v406, %v466
      %v473 = vsub.f32 %v452, %v469
      %v474 = vmul.f32 %v470, 1.442695
      %v475 = vpow.pop %v474
      %v476 = vmul.f32 %v471, 1.442695
      %v477 = vpow.pop %v476
      %v478 = vmul.f32 %v472, 1.442695
      %v479 = vpow.pop %v478
      %v480 = vmul.f32 %v473, 1.442695
      %v481 = vpow.pop %v480
      %v482 = vsel %vm457, %v475, 0.0
      %483 = vadd.xlane.f32.xlu0 %v482
      %v484 = vpop.xlane.xlu0 %483
      %v485 = vsel %vm457, %v477, 0.0
      %486 = vadd.xlane.f32.xlu0 %v485
      %v487 = vpop.xlane.xlu0 %486
      %v488 = vsel %vm457, %v479, 0.0
      %489 = vadd.xlane.f32.xlu0 %v488
      %v490 = vpop.xlane.xlu0 %489
      %v491 = vsel %vm457, %v481, 0.0
      %492 = vadd.xlane.f32.xlu0 %v491
      %v493 = vpop.xlane.xlu0 %492
      %v494 = vpack.c.bf16 %v475, %v475
      %v495 = vpack.c.bf16 %v477, %v477
      %v496 = vpack.c.bf16 %v479, %v479
      %v497 = vpack.c.bf16 %v481, %v481
      %v499 = vsel %vm457, %v494, 0
      %vm501 = vcmask 1043456
      %v503 = vsel %vm501, %v261, 0
      %505 = vmatprep.subr.bf16.mxu0 0
      %506 = vmatpush1.bf16.msra.mxu0 %v503
      %507 = vmatprep.subr.bf16.mxu0 0
      %508 = vmatpush1.bf16.msra.mxu0 0
      %509 = vmatprep.subr.bf16.mxu0 0
      %510 = vmatpush1.bf16.msra.mxu0 0
      %511 = vmatprep.subr.bf16.mxu0 0
      %512 = vmatpush1.bf16.msra.mxu0 0
      %513 = vmatprep.subr.bf16.mxu0 0
      %514 = vmatpush1.bf16.msra.mxu0 0
      %515 = vmatprep.subr.bf16.mxu0 0
      %516 = vmatpush1.bf16.msra.mxu0 0
      %517 = vmatprep.subr.bf16.mxu0 0
      %518 = vmatpush1.bf16.msra.mxu0 0
      %519 = vmatprep.subr.bf16.mxu0 0
      %520 = vmatpush1.bf16.msra.mxu0 0
      %521 = vmatprep.subr.bf16.mxu0 0
      %522 = vmatpush1.bf16.msra.mxu0 0
      %523 = vmatprep.subr.bf16.mxu0 0
      %524 = vmatpush1.bf16.msra.mxu0 0
      %525 = vmatprep.subr.bf16.mxu0 0
      %526 = vmatpush1.bf16.msra.mxu0 0
      %527 = vmatprep.subr.bf16.mxu0 0
      %528 = vmatpush1.bf16.msra.mxu0 0
      %529 = vmatprep.subr.bf16.mxu0 0
      %530 = vmatpush1.bf16.msra.mxu0 0
      %531 = vmatprep.subr.bf16.mxu0 0
      %532 = vmatpush1.bf16.msra.mxu0 0
      %533 = vmatprep.subr.bf16.mxu0 0
      %534 = vmatpush1.bf16.msra.mxu0 0
      %535 = vmatprep.subr.bf16.mxu0 0
      %536 = vmatpush1.bf16.msra.mxu0 0
      %537 = vmatprep.mubr.bf16.mxu0 0
      %538 = vmatmul.mubr.bf16.gmra.mrb[0].mxu0 %v499
      %v539 = vpop.f32.mrb[0].mxu0
      %v540 = vadd.f32 0.0, %v539
      %v541 = vpop.f32.mrb[0].mxu0
      %v542 = vpop.f32.mrb[0].mxu0
      %v543 = vpop.f32.mrb[0].mxu0
      %544 = vdwg.mxu0
      %v546 = vsel %vm457, %v495, 0
      %v549 = vsel %vm501, %v262, 0
      %551 = vmatprep.subr.bf16.mxu0 0
      %552 = vmatpush1.bf16.msra.mxu0 %v549
      %553 = vmatprep.subr.bf16.mxu0 0
      %554 = vmatpush1.bf16.msra.mxu0 0
      %555 = vmatprep.subr.bf16.mxu0 0
      %556 = vmatpush1.bf16.msra.mxu0 0
      %557 = vmatprep.subr.bf16.mxu0 0
      %558 = vmatpush1.bf16.msra.mxu0 0
      %559 = vmatprep.subr.bf16.mxu0 0
      %560 = vmatpush1.bf16.msra.mxu0 0
      %561 = vmatprep.subr.bf16.mxu0 0
      %562 = vmatpush1.bf16.msra.mxu0 0
      %563 = vmatprep.subr.bf16.mxu0 0
      %564 = vmatpush1.bf16.msra.mxu0 0
      %565 = vmatprep.subr.bf16.mxu0 0
      %566 = vmatpush1.bf16.msra.mxu0 0
      %567 = vmatprep.subr.bf16.mxu0 0
      %568 = vmatpush1.bf16.msra.mxu0 0
      %569 = vmatprep.subr.bf16.mxu0 0
      %570 = vmatpush1.bf16.msra.mxu0 0
      %571 = vmatprep.subr.bf16.mxu0 0
      %572 = vmatpush1.bf16.msra.mxu0 0
      %573 = vmatprep.subr.bf16.mxu0 0
      %574 = vmatpush1.bf16.msra.mxu0 0
      %575 = vmatprep.subr.bf16.mxu0 0
      %576 = vmatpush1.bf16.msra.mxu0 0
      %577 = vmatprep.subr.bf16.mxu0 0
      %578 = vmatpush1.bf16.msra.mxu0 0
      %579 = vmatprep.subr.bf16.mxu0 0
      %580 = vmatpush1.bf16.msra.mxu0 0
      %581 = vmatprep.subr.bf16.mxu0 0
      %582 = vmatpush1.bf16.msra.mxu0 0
      %583 = vmatprep.mubr.bf16.mxu0 0
      %584 = vmatmul.mubr.bf16.gmra.mrb[0].mxu0 %v546
      %v585 = vpop.f32.mrb[0].mxu0
      %v586 = vadd.f32 0.0, %v585
      %v587 = vpop.f32.mrb[0].mxu0
      %v588 = vpop.f32.mrb[0].mxu0
      %v589 = vpop.f32.mrb[0].mxu0
      %590 = vdwg.mxu0
      %v592 = vsel %vm457, %v496, 0
      %v595 = vsel %vm501, %v263, 0
      %597 = vmatprep.subr.bf16.mxu0 0
      %598 = vmatpush1.bf16.msra.mxu0 %v595
      %599 = vmatprep.subr.bf16.mxu0 0
      %600 = vmatpush1.bf16.msra.mxu0 0
      %601 = vmatprep.subr.bf16.mxu0 0
      %602 = vmatpush1.bf16.msra.mxu0 0
      %603 = vmatprep.subr.bf16.mxu0 0
      %604 = vmatpush1.bf16.msra.mxu0 0
      %605 = vmatprep.subr.bf16.mxu0 0
      %606 = vmatpush1.bf16.msra.mxu0 0
      %607 = vmatprep.subr.bf16.mxu0 0
      %608 = vmatpush1.bf16.msra.mxu0 0
      %609 = vmatprep.subr.bf16.mxu0 0
      %610 = vmatpush1.bf16.msra.mxu0 0
      %611 = vmatprep.subr.bf16.mxu0 0
      %612 = vmatpush1.bf16.msra.mxu0 0
      %613 = vmatprep.subr.bf16.mxu0 0
      %614 = vmatpush1.bf16.msra.mxu0 0
      %615 = vmatprep.subr.bf16.mxu0 0
      %616 = vmatpush1.bf16.msra.mxu0 0
      %617 = vmatprep.subr.bf16.mxu0 0
      %618 = vmatpush1.bf16.msra.mxu0 0
      %619 = vmatprep.subr.bf16.mxu0 0
      %620 = vmatpush1.bf16.msra.mxu0 0
      %621 = vmatprep.subr.bf16.mxu0 0
      %622 = vmatpush1.bf16.msra.mxu0 0
      %623 = vmatprep.subr.bf16.mxu0 0
      %624 = vmatpush1.bf16.msra.mxu0 0
      %625 = vmatprep.subr.bf16.mxu0 0
      %626 = vmatpush1.bf16.msra.mxu0 0
      %627 = vmatprep.subr.bf16.mxu0 0
      %628 = vmatpush1.bf16.msra.mxu0 0
      %629 = vmatprep.mubr.bf16.mxu0 0
      %630 = vmatmul.mubr.bf16.gmra.mrb[0].mxu0 %v592
      %v631 = vpop.f32.mrb[0].mxu0
      %v632 = vadd.f32 0.0, %v631
      %v633 = vpop.f32.mrb[0].mxu0
      %v634 = vpop.f32.mrb[0].mxu0
      %v635 = vpop.f32.mrb[0].mxu0
      %636 = vdwg.mxu0
      %v638 = vsel %vm457, %v497, 0
      %v641 = vsel %vm501, %v264, 0
      %643 = vmatprep.subr.bf16.mxu0 0
      %644 = vmatpush1.bf16.msra.mxu0 %v641
      %645 = vmatprep.subr.bf16.mxu0 0
      %646 = vmatpush1.bf16.msra.mxu0 0
      %647 = vmatprep.subr.bf16.mxu0 0
      %648 = vmatpush1.bf16.msra.mxu0 0
      %649 = vmatprep.subr.bf16.mxu0 0
      %650 = vmatpush1.bf16.msra.mxu0 0
      %651 = vmatprep.subr.bf16.mxu0 0
      %652 = vmatpush1.bf16.msra.mxu0 0
      %653 = vmatprep.subr.bf16.mxu0 0
      %654 = vmatpush1.bf16.msra.mxu0 0
      %655 = vmatprep.subr.bf16.mxu0 0
      %656 = vmatpush1.bf16.msra.mxu0 0
      %657 = vmatprep.subr.bf16.mxu0 0
      %658 = vmatpush1.bf16.msra.mxu0 0
      %659 = vmatprep.subr.bf16.mxu0 0
      %660 = vmatpush1.bf16.msra.mxu0 0
      %661 = vmatprep.subr.bf16.mxu0 0
      %662 = vmatpush1.bf16.msra.mxu0 0
      %663 = vmatprep.subr.bf16.mxu0 0
      %664 = vmatpush1.bf16.msra.mxu0 0
      %665 = vmatprep.subr.bf16.mxu0 0
      %666 = vmatpush1.bf16.msra.mxu0 0
      %667 = vmatprep.subr.bf16.mxu0 0
      %668 = vmatpush1.bf16.msra.mxu0 0
      %669 = vmatprep.subr.bf16.mxu0 0
      %670 = vmatpush1.bf16.msra.mxu0 0
      %671 = vmatprep.subr.bf16.mxu0 0
      %672 = vmatpush1.bf16.msra.mxu0 0
      %673 = vmatprep.subr.bf16.mxu0 0
      %674 = vmatpush1.bf16.msra.mxu0 0
      %675 = vmatprep.mubr.bf16.mxu0 0
      %676 = vmatmul.mubr.bf16.gmra.mrb[0].mxu0 %v638
      %v677 = vpop.f32.mrb[0].mxu0
      %v678 = vadd.f32 0.0, %v677
      %v679 = vpop.f32.mrb[0].mxu0
      %v680 = vpop.f32.mrb[0].mxu0
      %v681 = vpop.f32.mrb[0].mxu0
      %682 = vdwg.mxu0
      %v683 = vrcp.pop %v484
      %v684 = vrcp.pop %v487
      %v685 = vrcp.pop %v490
      %v686 = vrcp.pop %v493
      %v687 = vmul.f32 %v540, %v683
      %v688 = vmul.f32 %v586, %v684
      %v689 = vmul.f32 %v632, %v685
      %v690 = vmul.f32 %v678, %v686
      %v691 = vpack.c.bf16 %v687, %v687
      %v692 = vpack.c.bf16 %v688, %v688
      %v693 = vpack.c.bf16 %v689, %v689
      %v694 = vpack.c.bf16 %v690, %v690
      %vm695 = vcmask 125952
      %696 = vst.msk [vmem:[%s251] sm:$0xf] %vm695, %v691
      %697 = vst.msk [vmem:[%s251 + $0x4] sm:$0xf] %vm695, %v692
      %698 = vst.msk [vmem:[%s251 + $0x8] sm:$0xf] %vm695, %v693
      %699 = vst.msk [vmem:[%s251 + $0xc] sm:$0xf] %vm695, %v694
      %p700 = scmp.lt.s32.totalorder %s15, 1
      %s701 = scalar_select %p700, %s15, 1
      %s702 = smul.addr %s701, 4
      %s703 = smul.addr %s702, 4
      %s704 = scalar_lea.vmem %s4, %s703
      // Predicated region
      $region37: #{esm2_forward.13} parent=35 // pred_check
        %p705 = pneg %p137
      $region38: #{esm2_forward.13} parent=35 // pred_check_branch
        %707 = sbr.rel (%p705) target = $region40
      $region39: #{esm2_forward.13} parent=35 // pred_region
        _
      $region40: #{esm2_forward.13} parent=35 // pred_fallthru
        _
    $region36: #{esm2_forward.13} parent=5 // pred_fallthru
      _
    %p708 = scmp.le.s32.totalorder 2, %s10
    // Predicated region
    $region41: #{esm2_forward.13} parent=5 // pred_check
      %p709 = pneg %p708
    $region42: #{esm2_forward.13} parent=5 // pred_check_branch
      %711 = sbr.rel (%p709) target = $region44
    $region43: #{esm2_forward.13} parent=5 // pred_region
      %s712 = ssub.s32 %s10, 2
      // Predicated region
      $region45: #{esm2_forward.13} parent=43 // pred_check
        %p713 = pneg %p143
      $region46: #{esm2_forward.13} parent=43 // pred_check_branch
        %715 = sbr.rel (%p713) target = $region48
      $region47: #{esm2_forward.13} parent=43 // pred_region
        %p716 = scmp.lt.s32.totalorder %s16, 1
        %s717 = scalar_select %p716, %s16, 1
        %s718 = smul.addr %s717, 4
        %s719 = smul.addr %s718, 4
        %s720 = scalar_lea.vmem %s4, %s719
      $region48: #{esm2_forward.13} parent=43 // pred_fallthru
        _
    $region44: #{esm2_forward.13} parent=5 // pred_fallthru
      _
  $region6: #{esm2_forward.13} parent=0 // loop_footer
    %s14 = sadd.s32 1, %s10
  $region7: #{esm2_forward.13} parent=0 // loop_footer_branch
    %9 = sbr.rel target = $region3
  $region8: #{esm2_forward.13} parent=0 // loop_exit
    _

// kernel: esm2_forward.15
$region0: #{esm2_forward.15}
  #allocation0 [shape = 'u32[]', space=smem, size = 0x4, offset = 0x4, fixed_abs, tag = 'smem constant byte address 0x4 - core index']
  #allocation1 [shape = 'u32[144,128]{1,0:T(1,128)}', space=vmem, size = 0x12000, scoped, tag = 'internal scratch']
  %s0 = inlined_call_operand.vmem [shape: bf16[16,64], index: 0, kind: input, shape index: {}]
  %s1 = inlined_call_operand.vmem [shape: f32[1,64], index: 1, kind: input, shape index: {}]
  %s2 = inlined_call_operand.vmem [shape: f32[1,64], index: 2, kind: input, shape index: {}]
  %s3 = inlined_call_operand.vmem [shape: bf16[64,256], index: 3, kind: input, shape index: {}]
  %s4 = inlined_call_operand.vmem [shape: f32[1,256], index: 4, kind: input, shape index: {}]
  %s5 = inlined_call_operand.vmem [shape: bf16[16,256], index: 5, kind: output, shape index: {}]
  %s6 = sld [smem:[#allocation0]]
  $region30: #{esm2_forward.15} parent=0
    _
  %s8 = ssub.s32 1, %s6
  %s9 = scalar_select 0, %s8, %s6
  // Predicated region
  $region2: #{esm2_forward.15} parent=0 // pred_check
    _
  $region3: #{esm2_forward.15} parent=0 // pred_check_branch
    %11 = sbr.rel (0) target = $region5
  $region4: #{esm2_forward.15} parent=0 // pred_region
    _
  $region5: #{esm2_forward.15} parent=0 // pred_fallthru
    _
  // Predicated region
  $region6: #{esm2_forward.15} parent=0 // pred_check
    _
  $region7: #{esm2_forward.15} parent=0 // pred_check_branch
    %13 = sbr.rel (0) target = $region9
  $region8: #{esm2_forward.15} parent=0 // pred_region
    _
  $region9: #{esm2_forward.15} parent=0 // pred_fallthru
    _
  // Predicated region
  $region10: #{esm2_forward.15} parent=0 // pred_check
    _
  $region11: #{esm2_forward.15} parent=0 // pred_check_branch
    %15 = sbr.rel (0) target = $region13
  $region12: #{esm2_forward.15} parent=0 // pred_region
    _
  $region13: #{esm2_forward.15} parent=0 // pred_fallthru
    _
  // Predicated region
  $region14: #{esm2_forward.15} parent=0 // pred_check
    _
  $region15: #{esm2_forward.15} parent=0 // pred_check_branch
    %17 = sbr.rel (0) target = $region17
  $region16: #{esm2_forward.15} parent=0 // pred_region
    _
  $region17: #{esm2_forward.15} parent=0 // pred_fallthru
    _
  // Predicated region
  $region18: #{esm2_forward.15} parent=0 // pred_check
    _
  $region19: #{esm2_forward.15} parent=0 // pred_check_branch
    %19 = sbr.rel (0) target = $region21
  $region20: #{esm2_forward.15} parent=0 // pred_region
    _
  $region21: #{esm2_forward.15} parent=0 // pred_fallthru
    _
  %v21 = vld [vmem:[%s0] sm:$0xf]
  %v22 = vld [vmem:[%s0 + $0x4] sm:$0xf]
  %v23 = vunpack.c.l.bf16 %v21
  %v24 = vunpack.c.l.bf16 %v22
  %vm25 = vcmask 523264
  %v26 = vsel %vm25, %v23, 0.0
  %27 = vadd.xlane.f32.xlu0 %v26
  %v28 = vpop.xlane.xlu0 %27
  %v29 = vsel %vm25, %v24, 0.0
  %30 = vadd.xlane.f32.xlu0 %v29
  %v31 = vpop.xlane.xlu0 %30
  %v32 = vrcp.pop 64.0
  %v33 = vmul.f32 %v28, %v32
  %v34 = vmul.f32 %v31, %v32
  %v35 = vsub.f32 %v23, %v33
  %v36 = vsub.f32 %v24, %v34
  %v37 = vmul.f32 %v35, %v35
  %v38 = vmul.f32 %v36, %v36
  %v39 = vsel %vm25, %v37, 0.0
  %40 = vadd.xlane.f32.xlu0 %v39
  %v41 = vpop.xlane.xlu0 %40
  %v42 = vsel %vm25, %v38, 0.0
  %43 = vadd.xlane.f32.xlu0 %v42
  %v44 = vpop.xlane.xlu0 %43
  %v45 = vmul.f32 %v41, %v32
  %v46 = vmul.f32 %v44, %v32
  %v47 = vadd.f32 %v45, 1e-05
  %v48 = vadd.f32 %v46, 1e-05
  %v49 = vrsqrt.pop %v47
  %v50 = vrsqrt.pop %v48
  %v51 = vmul.f32 %v35, %v49
  %v52 = vmul.f32 %v36, %v50
  %v53 = vld [vmem:[%s1] sm:$0x1]
  %v55 = vlaneseq
  %v56 = vshrl.u32 %v55, 7
  %v57 = vsub.s32 0, %v56
  %v58 = vrot.slane %v53, %v57
  %v60 = vmul.f32 %v51, %v58
  %v61 = vmul.f32 %v52, %v58
  %v62 = vld [vmem:[%s2] sm:$0x1]
  %v64 = vlaneseq
  %v65 = vshrl.u32 %v64, 7
  %v66 = vsub.s32 0, %v65
  %v67 = vrot.slane %v62, %v66
  %v69 = vadd.f32 %v60, %v67
  %v70 = vadd.f32 %v61, %v67
  %v71 = vpack.c.bf16 %v70, %v69
  %v72 = vld [vmem:[%s3] sm:$0xff]
  %v73 = vld [vmem:[%s3 + $0x8] sm:$0xff]
  %v74 = vld [vmem:[%s3 + $0x10] sm:$0xff]
  %v75 = vld [vmem:[%s3 + $0x18] sm:$0xff]
  %v76 = vld [vmem:[%s3 + $0x20] sm:$0xff]
  %v77 = vld [vmem:[%s3 + $0x28] sm:$0xff]
  %v78 = vld [vmem:[%s3 + $0x30] sm:$0xff]
  %v79 = vld [vmem:[%s3 + $0x38] sm:$0xff]
  %v80 = vld [vmem:[%s4] sm:$0x3]
  %v82 = vlaneseq
  %v83 = vshrl.u32 %v82, 7
  %v84 = vsub.s32 0, %v83
  %v85 = vrot.slane %v80, %v84
  %v86 = vlaneseq
  %v87 = vshrl.u32 %v86, 7
  %v88 = vsub.s32 1, %v87
  %v89 = vrot.slane %v80, %v88
  %v100 = vunpack.c.l.b16 %v72
  %v101 = vunpack.c.h.b16 %v72
  %v102 = vunpack.c.l.b16 %v73
  %v103 = vunpack.c.h.b16 %v73
  %v104 = vunpack.c.l.b16 %v74
  %v105 = vunpack.c.h.b16 %v74
  %v106 = vunpack.c.l.b16 %v75
  %v107 = vunpack.c.h.b16 %v75
  %v108 = vunpack.c.l.b16 %v76
  %v109 = vunpack.c.h.b16 %v76
  %v110 = vunpack.c.l.b16 %v77
  %v111 = vunpack.c.h.b16 %v77
  %v112 = vunpack.c.l.b16 %v78
  %v113 = vunpack.c.h.b16 %v78
  %v114 = vunpack.c.l.b16 %v79
  %v115 = vunpack.c.h.b16 %v79
  %v116 = vpack.c.b16 %v102, %v100
  %v117 = vpack.c.b16 %v103, %v101
  %v118 = vpack.c.b16 %v106, %v104
  %v119 = vpack.c.b16 %v107, %v105
  %v120 = vpack.c.b16 %v110, %v108
  %v121 = vpack.c.b16 %v111, %v109
  %v122 = vpack.c.b16 %v114, %v112
  %v123 = vpack.c.b16 %v115, %v113
  %v133 = vsel %vm25, %v71, 0
  %135 = vmatprep.subr.bf16.mxu0 %v117
  %136 = vmatpush1.bf16.msra.mxu0 %v116
  %137 = vmatprep.subr.bf16.mxu0 %v119
  %138 = vmatpush1.bf16.msra.mxu0 %v118
  %139 = vmatprep.subr.bf16.mxu0 %v121
  %140 = vmatpush1.bf16.msra.mxu0 %v120
  %141 = vmatprep.subr.bf16.mxu0 %v123
  %142 = vmatpush1.bf16.msra.mxu0 %v122
  %143 = vmatprep.subr.bf16.mxu0 0
  %144 = vmatpush1.bf16.msra.mxu0 0
  %145 = vmatprep.subr.bf16.mxu0 0
  %146 = vmatpush1.bf16.msra.mxu0 0
  %147 = vmatprep.subr.bf16.mxu0 0
  %148 = vmatpush1.bf16.msra.mxu0 0
  %149 = vmatprep.subr.bf16.mxu0 0
  %150 = vmatpush1.bf16.msra.mxu0 0
  %151 = vmatprep.subr.bf16.mxu0 0
  %152 = vmatpush1.bf16.msra.mxu0 0
  %153 = vmatprep.subr.bf16.mxu0 0
  %154 = vmatpush1.bf16.msra.mxu0 0
  %155 = vmatprep.subr.bf16.mxu0 0
  %156 = vmatpush1.bf16.msra.mxu0 0
  %157 = vmatprep.subr.bf16.mxu0 0
  %158 = vmatpush1.bf16.msra.mxu0 0
  %159 = vmatprep.subr.bf16.mxu0 0
  %160 = vmatpush1.bf16.msra.mxu0 0
  %161 = vmatprep.subr.bf16.mxu0 0
  %162 = vmatpush1.bf16.msra.mxu0 0
  %163 = vmatprep.subr.bf16.mxu0 0
  %164 = vmatpush1.bf16.msra.mxu0 0
  %165 = vmatprep.subr.bf16.mxu0 0
  %166 = vmatpush1.bf16.msra.mxu0 0
  %167 = vmatprep.mubr.bf16.mxu0 0
  %168 = vmatmul.mubr.bf16.gmra.mrb[0].mxu0 %v133
  %v169 = vpop.f32.mrb[0].mxu0
  %v170 = vadd.f32 %v85, %v169
  %v171 = vpop.f32.mrb[0].mxu0
  %v172 = vadd.f32 %v89, %v171
  %v173 = vpop.f32.mrb[0].mxu0
  %v174 = vadd.f32 %v85, %v173
  %v175 = vpop.f32.mrb[0].mxu0
  %v176 = vadd.f32 %v89, %v175
  %177 = vdwg.mxu0
  %v178 = vmul.f32 %v170, 0.5
  %v179 = vmul.f32 %v172, 0.5
  %v180 = vmul.f32 %v174, 0.5
  %v181 = vmul.f32 %v176, 0.5
  %v182 = vmul.f32 %v170, 0.70710677
  %v183 = vmul.f32 %v172, 0.70710677
  %v184 = vmul.f32 %v174, 0.70710677
  %v185 = vmul.f32 %v176, 0.70710677
  %vm186 = vcmp.ge.f32.partialorder %v182, 0.0
  %vm187 = vcmp.ge.f32.partialorder %v183, 0.0
  %vm188 = vcmp.ge.f32.partialorder %v184, 0.0
  %vm189 = vcmp.ge.f32.partialorder %v185, 0.0
  %v190 = vsel %vm186, 1.0, -1.0
  %v191 = vsel %vm187, 1.0, -1.0
  %v192 = vsel %vm188, 1.0, -1.0
  %v193 = vsel %vm189, 1.0, -1.0
  %v194 = vand.u32 2147483647, %v182
  %v195 = vand.u32 2147483647, %v183
  %v196 = vand.u32 2147483647, %v184
  %v197 = vand.u32 2147483647, %v185
  %v198 = vmul.f32 %v194, 0.3275911
  %v199 = vmul.f32 %v195, 0.3275911
  %v200 = vmul.f32 %v196, 0.3275911
  %v201 = vmul.f32 %v197, 0.3275911
  %v202 = vadd.f32 %v198, 1.0
  %v203 = vadd.f32 %v199, 1.0
  %v204 = vadd.f32 %v200, 1.0
  %v205 = vadd.f32 %v201, 1.0
  %v206 = vrcp.pop %v202
  %v207 = vmul.f32 1.0, %v206
  %v208 = vrcp.pop %v203
  %v209 = vmul.f32 1.0, %v208
  %v210 = vrcp.pop %v204
  %v211 = vmul.f32 1.0, %v210
  %v212 = vrcp.pop %v205
  %v213 = vmul.f32 1.0, %v212
  %v214 = vmul.f32 %v207, 1.0614054
  %v215 = vmul.f32 %v209, 1.0614054
  %v216 = vmul.f32 %v211, 1.0614054
  %v217 = vmul.f32 %v213, 1.0614054
  %v218 = vadd.f32 %v214, -1.4531521
  %v219 = vadd.f32 %v215, -1.4531521
  %v220 = vadd.f32 %v216, -1.4531521
  %v221 = vadd.f32 %v217, -1.4531521
  %v222 = vmul.f32 %v218, %v207
  %v223 = vmul.f32 %v219, %v209
  %v224 = vmul.f32 %v220, %v211
  %v225 = vmul.f32 %v221, %v213
  %v226 = vadd.f32 %v222, 1.4214138
  %v227 = vadd.f32 %v223, 1.4214138
  %v228 = vadd.f32 %v224, 1.4214138
  %v229 = vadd.f32 %v225, 1.4214138
  %v230 = vmul.f32 %v226, %v207
  %v231 = vmul.f32 %v227, %v209
  %v232 = vmul.f32 %v228, %v211
  %v233 = vmul.f32 %v229, %v213
  %v234 = vadd.f32 %v230, -0.28449672
  %v235 = vadd.f32 %v231, -0.28449672
  %v236 = vadd.f32 %v232, -0.28449672
  %v237 = vadd.f32 %v233, -0.28449672
  %v238 = vmul.f32 %v234, %v207
  %v239 = vmul.f32 %v235, %v209
  %v240 = vmul.f32 %v236, %v211
  %v241 = vmul.f32 %v237, %v213
  %v242 = vadd.f32 %v238, 0.2548296
  %v243 = vadd.f32 %v239, 0.2548296
  %v244 = vadd.f32 %v240, 0.2548296
  %v245 = vadd.f32 %v241, 0.2548296
  %v246 = vmul.f32 %v242, %v207
  %v247 = vmul.f32 %v243, %v209
  %v248 = vmul.f32 %v244, %v211
  %v249 = vmul.f32 %v245, %v213
  %v250 = vsub.f32 0.0, %v194
  %v251 = vsub.f32 0.0, %v195
  %v252 = vsub.f32 0.0, %v196
  %v253 = vsub.f32 0.0, %v197
  %v254 = vmul.f32 %v250, %v194
  %v255 = vmul.f32 %v251, %v195
  %v256 = vmul.f32 %v252, %v196
  %v257 = vmul.f32 %v253, %v197
  %v258 = vmul.f32 %v254, 1.442695
  %v259 = vpow.pop %v258
  %v260 = vmul.f32 %v255, 1.442695
  %v261 = vpow.pop %v260
  %v262 = vmul.f32 %v256, 1.442695
  %v263 = vpow.pop %v262
  %v264 = vmul.f32 %v257, 1.442695
  %v265 = vpow.pop %v264
  %v266 = vmul.f32 %v246, %v259
  %v267 = vmul.f32 %v247, %v261
  %v268 = vmul.f32 %v248, %v263
  %v269 = vmul.f32 %v249, %v265
  %v270 = vsub.f32 1.0, %v266
  %v271 = vsub.f32 1.0, %v267
  %v272 = vsub.f32 1.0, %v268
  %v273 = vsub.f32 1.0, %v269
  %v274 = vmul.f32 %v190, %v270
  %v275 = vmul.f32 %v191, %v271
  %v276 = vmul.f32 %v192, %v272
  %v277 = vmul.f32 %v193, %v273
  %v278 = vadd.f32 %v274, 1.0
  %v279 = vadd.f32 %v275, 1.0
  %v280 = vadd.f32 %v276, 1.0
  %v281 = vadd.f32 %v277, 1.0
  %v282 = vmul.f32 %v178, %v278
  %v283 = vmul.f32 %v179, %v279
  %v284 = vmul.f32 %v180, %v280
  %v285 = vmul.f32 %v181, %v281
  %v286 = vpack.c.bf16 %v284, %v282
  %v287 = vpack.c.bf16 %v285, %v283
  %v290 = vunpack.c.l.b16 %v286
  %v291 = vunpack.c.l.b16 %v287
  %v292 = vunpack.c.h.b16 %v286
  %v293 = vunpack.c.h.b16 %v287
  %v294 = vpack.c.b16 %v291, %v290
  %v295 = vpack.c.b16 %v293, %v292
  %298 = vst [vmem:[%s5] sm:$0xff] %v294
  %299 = vst [vmem:[%s5 + $0x8] sm:$0xff] %v295
  // Predicated region
  $region22: #{esm2_forward.15} parent=0 // pred_check
    _
  $region23: #{esm2_forward.15} parent=0 // pred_check_branch
    %301 = sbr.rel (0) target = $region25
  $region24: #{esm2_forward.15} parent=0 // pred_region
    _
  $region25: #{esm2_forward.15} parent=0 // pred_fallthru
    _
  // Predicated region
  $region26: #{esm2_forward.15} parent=0 // pred_check
    _
  $region27: #{esm2_forward.15} parent=0 // pred_check_branch
    %303 = sbr.rel (0) target = $region29
  $region28: #{esm2_forward.15} parent=0 // pred_region
    _
  $region29: #{esm2_forward.15} parent=0 // pred_fallthru
    _

// kernel: esm2_forward.16
$region0: #{esm2_forward.16}
  #allocation0 [shape = 'u32[]', space=smem, size = 0x4, offset = 0x4, fixed_abs, tag = 'smem constant byte address 0x4 - core index']
  #allocation1 [shape = 'u32[144,128]{1,0:T(1,128)}', space=vmem, size = 0x12000, scoped, tag = 'internal scratch']
  %s0 = inlined_call_operand.vmem [shape: bf16[16,256], index: 0, kind: input, shape index: {}]
  %s1 = inlined_call_operand.vmem [shape: bf16[256,64], index: 1, kind: input, shape index: {}]
  %s2 = inlined_call_operand.vmem [shape: f32[1,64], index: 2, kind: input, shape index: {}]
  %s3 = inlined_call_operand.vmem [shape: bf16[16,64], index: 3, kind: input, shape index: {}]
  %s4 = inlined_call_operand.vmem [shape: bf16[16,64], index: 4, kind: output, shape index: {}]
  %s5 = sld [smem:[#allocation0]]
  $region26: #{esm2_forward.16} parent=0
    _
  %s7 = ssub.s32 1, %s5
  %s8 = scalar_select 0, %s7, %s5
  // Predicated region
  $region2: #{esm2_forward.16} parent=0 // pred_check
    _
  $region3: #{esm2_forward.16} parent=0 // pred_check_branch
    %10 = sbr.rel (0) target = $region5
  $region4: #{esm2_forward.16} parent=0 // pred_region
    _
  $region5: #{esm2_forward.16} parent=0 // pred_fallthru
    _
  // Predicated region
  $region6: #{esm2_forward.16} parent=0 // pred_check
    _
  $region7: #{esm2_forward.16} parent=0 // pred_check_branch
    %12 = sbr.rel (0) target = $region9
  $region8: #{esm2_forward.16} parent=0 // pred_region
    _
  $region9: #{esm2_forward.16} parent=0 // pred_fallthru
    _
  // Predicated region
  $region10: #{esm2_forward.16} parent=0 // pred_check
    _
  $region11: #{esm2_forward.16} parent=0 // pred_check_branch
    %14 = sbr.rel (0) target = $region13
  $region12: #{esm2_forward.16} parent=0 // pred_region
    _
  $region13: #{esm2_forward.16} parent=0 // pred_fallthru
    _
  // Predicated region
  $region14: #{esm2_forward.16} parent=0 // pred_check
    _
  $region15: #{esm2_forward.16} parent=0 // pred_check_branch
    %16 = sbr.rel (0) target = $region17
  $region16: #{esm2_forward.16} parent=0 // pred_region
    _
  $region17: #{esm2_forward.16} parent=0 // pred_fallthru
    _
  %v18 = vld [vmem:[%s0] sm:$0xff]
  %v19 = vld [vmem:[%s0 + $0x8] sm:$0xff]
  %v20 = vld [vmem:[%s1] sm:$0xf]
  %v21 = vld [vmem:[%s1 + $0x4] sm:$0xf]
  %v22 = vld [vmem:[%s1 + $0x8] sm:$0xf]
  %v23 = vld [vmem:[%s1 + $0xc] sm:$0xf]
  %v24 = vld [vmem:[%s1 + $0x10] sm:$0xf]
  %v25 = vld [vmem:[%s1 + $0x14] sm:$0xf]
  %v26 = vld [vmem:[%s1 + $0x18] sm:$0xf]
  %v27 = vld [vmem:[%s1 + $0x1c] sm:$0xf]
  %v28 = vld [vmem:[%s1 + $0x20] sm:$0xf]
  %v29 = vld [vmem:[%s1 + $0x24] sm:$0xf]
  %v30 = vld [vmem:[%s1 + $0x28] sm:$0xf]
  %v31 = vld [vmem:[%s1 + $0x2c] sm:$0xf]
  %v32 = vld [vmem:[%s1 + $0x30] sm:$0xf]
  %v33 = vld [vmem:[%s1 + $0x34] sm:$0xf]
  %v34 = vld [vmem:[%s1 + $0x38] sm:$0xf]
  %v35 = vld [vmem:[%s1 + $0x3c] sm:$0xf]
  %v36 = vld [vmem:[%s1 + $0x40] sm:$0xf]
  %v37 = vld [vmem:[%s1 + $0x44] sm:$0xf]
  %v38 = vld [vmem:[%s1 + $0x48] sm:$0xf]
  %v39 = vld [vmem:[%s1 + $0x4c] sm:$0xf]
  %v40 = vld [vmem:[%s1 + $0x50] sm:$0xf]
  %v41 = vld [vmem:[%s1 + $0x54] sm:$0xf]
  %v42 = vld [vmem:[%s1 + $0x58] sm:$0xf]
  %v43 = vld [vmem:[%s1 + $0x5c] sm:$0xf]
  %v44 = vld [vmem:[%s1 + $0x60] sm:$0xf]
  %v45 = vld [vmem:[%s1 + $0x64] sm:$0xf]
  %v46 = vld [vmem:[%s1 + $0x68] sm:$0xf]
  %v47 = vld [vmem:[%s1 + $0x6c] sm:$0xf]
  %v48 = vld [vmem:[%s1 + $0x70] sm:$0xf]
  %v49 = vld [vmem:[%s1 + $0x74] sm:$0xf]
  %v50 = vld [vmem:[%s1 + $0x78] sm:$0xf]
  %v51 = vld [vmem:[%s1 + $0x7c] sm:$0xf]
  %v52 = vld [vmem:[%s2] sm:$0x1]
  %v54 = vlaneseq
  %v55 = vshrl.u32 %v54, 7
  %v56 = vsub.s32 0, %v55
  %v57 = vrot.slane %v52, %v56
  %v61 = vunpack.c.l.b16 %v18
  %v62 = vunpack.c.h.b16 %v18
  %v63 = vunpack.c.l.b16 %v19
  %v64 = vunpack.c.h.b16 %v19
  %v65 = vpack.c.b16 %v63, %v61
  %v66 = vpack.c.b16 %v64, %v62
  %v101 = vunpack.c.l.b16 %v20
  %v102 = vunpack.c.l.b16 %v21
  %v103 = vunpack.c.l.b16 %v22
  %v104 = vunpack.c.l.b16 %v23
  %v105 = vunpack.c.l.b16 %v24
  %v106 = vunpack.c.l.b16 %v25
  %v107 = vunpack.c.l.b16 %v26
  %v108 = vunpack.c.l.b16 %v27
  %v109 = vunpack.c.l.b16 %v28
  %v110 = vunpack.c.l.b16 %v29
  %v111 = vunpack.c.l.b16 %v30
  %v112 = vunpack.c.l.b16 %v31
  %v113 = vunpack.c.l.b16 %v32
  %v114 = vunpack.c.l.b16 %v33
  %v115 = vunpack.c.l.b16 %v34
  %v116 = vunpack.c.l.b16 %v35
  %v117 = vunpack.c.l.b16 %v36
  %v118 = vunpack.c.l.b16 %v37
  %v119 = vunpack.c.l.b16 %v38
  %v120 = vunpack.c.l.b16 %v39
  %v121 = vunpack.c.l.b16 %v40
  %v122 = vunpack.c.l.b16 %v41
  %v123 = vunpack.c.l.b16 %v42
  %v124 = vunpack.c.l.b16 %v43
  %v125 = vunpack.c.l.b16 %v44
  %v126 = vunpack.c.l.b16 %v45
  %v127 = vunpack.c.l.b16 %v46
  %v128 = vunpack.c.l.b16 %v47
  %v129 = vunpack.c.l.b16 %v48
  %v130 = vunpack.c.l.b16 %v49
  %v131 = vunpack.c.l.b16 %v50
  %v132 = vunpack.c.l.b16 %v51
  %v133 = vpack.c.b16 %v102, %v101
  %v134 = vpack.c.b16 %v104, %v103
  %v135 = vpack.c.b16 %v106, %v105
  %v136 = vpack.c.b16 %v108, %v107
  %v137 = vpack.c.b16 %v110, %v109
  %v138 = vpack.c.b16 %v112, %v111
  %v139 = vpack.c.b16 %v114, %v113
  %v140 = vpack.c.b16 %v116, %v115
  %v141 = vpack.c.b16 %v118, %v117
  %v142 = vpack.c.b16 %v120, %v119
  %v143 = vpack.c.b16 %v122, %v121
  %v144 = vpack.c.b16 %v124, %v123
  %v145 = vpack.c.b16 %v126, %v125
  %v146 = vpack.c.b16 %v128, %v127
  %v147 = vpack.c.b16 %v130, %v129
  %v148 = vpack.c.b16 %v132, %v131
  %165 = vmatprep.subr.bf16.mxu0 0
  %166 = vmatpush1.bf16.msra.mxu0 %v133
  %167 = vmatprep.subr.bf16.mxu0 0
  %168 = vmatpush1.bf16.msra.mxu0 %v134
  %169 = vmatprep.subr.bf16.mxu0 0
  %170 = vmatpush1.bf16.msra.mxu0 %v135
  %171 = vmatprep.subr.bf16.mxu0 0
  %172 = vmatpush1.bf16.msra.mxu0 %v136
  %173 = vmatprep.subr.bf16.mxu0 0
  %174 = vmatpush1.bf16.msra.mxu0 %v137
  %175 = vmatprep.subr.bf16.mxu0 0
  %176 = vmatpush1.bf16.msra.mxu0 %v138
  %177 = vmatprep.subr.bf16.mxu0 0
  %178 = vmatpush1.bf16.msra.mxu0 %v139
  %179 = vmatprep.subr.bf16.mxu0 0
  %180 = vmatpush1.bf16.msra.mxu0 %v140
  %181 = vmatprep.subr.bf16.mxu0 0
  %182 = vmatpush1.bf16.msra.mxu0 %v141
  %183 = vmatprep.subr.bf16.mxu0 0
  %184 = vmatpush1.bf16.msra.mxu0 %v142
  %185 = vmatprep.subr.bf16.mxu0 0
  %186 = vmatpush1.bf16.msra.mxu0 %v143
  %187 = vmatprep.subr.bf16.mxu0 0
  %188 = vmatpush1.bf16.msra.mxu0 %v144
  %189 = vmatprep.subr.bf16.mxu0 0
  %190 = vmatpush1.bf16.msra.mxu0 %v145
  %191 = vmatprep.subr.bf16.mxu0 0
  %192 = vmatpush1.bf16.msra.mxu0 %v146
  %193 = vmatprep.subr.bf16.mxu0 0
  %194 = vmatpush1.bf16.msra.mxu0 %v147
  %195 = vmatprep.subr.bf16.mxu0 0
  %196 = vmatpush1.bf16.msra.mxu0 %v148
  %197 = vmatprep.mubr.bf16.mxu0 %v66
  %198 = vmatmul.mubr.bf16.gmra.mrb[0].mxu0 %v65
  %v199 = vpop.f32.mrb[0].mxu0
  %v200 = vadd.f32 %v57, %v199
  %v201 = vpop.f32.mrb[0].mxu0
  %v202 = vpop.f32.mrb[0].mxu0
  %v203 = vadd.f32 %v57, %v202
  %v204 = vpop.f32.mrb[0].mxu0
  %205 = vdwg.mxu0
  %v206 = vld [vmem:[%s3] sm:$0xf]
  %v207 = vld [vmem:[%s3 + $0x4] sm:$0xf]
  %v208 = vunpack.c.l.bf16 %v206
  %v209 = vunpack.c.l.bf16 %v207
  %v210 = vadd.f32 %v200, %v208
  %v211 = vadd.f32 %v203, %v209
  %v212 = vpack.c.bf16 %v211, %v210
  %v214 = vunpack.c.l.b16 %v212
  %v215 = vunpack.c.h.b16 %v212
  %v216 = vpack.c.b16 %v214, %v214
  %v217 = vpack.c.b16 %v215, %v215
  %vm220 = vcmask 519168
  %221 = vst.msk [vmem:[%s4] sm:$0xf] %vm220, %v216
  %222 = vst.msk [vmem:[%s4 + $0x4] sm:$0xf] %vm220, %v217
  // Predicated region
  $region18: #{esm2_forward.16} parent=0 // pred_check
    _
  $region19: #{esm2_forward.16} parent=0 // pred_check_branch
    %224 = sbr.rel (0) target = $region21
  $region20: #{esm2_forward.16} parent=0 // pred_region
    _
  $region21: #{esm2_forward.16} parent=0 // pred_fallthru
    _
  // Predicated region
  $region22: #{esm2_forward.16} parent=0 // pred_check
    _
  $region23: #{esm2_forward.16} parent=0 // pred_check_branch
    %226 = sbr.rel (0) target = $region25
  $region24: #{esm2_forward.16} parent=0 // pred_region
    _
  $region25: #{esm2_forward.16} parent=0 // pred_fallthru
    _

// kernel: esm2_forward.22
$region0: #{esm2_forward.22}
  #allocation0 [shape = 'u32[]', space=smem, size = 0x4, offset = 0x4, fixed_abs, tag = 'smem constant byte address 0x4 - core index']
  #allocation1 [shape = 'u32[144,128]{1,0:T(1,128)}', space=vmem, size = 0x12000, scoped, tag = 'internal scratch']
  %s0 = inlined_call_operand.vmem [shape: bf16[16,64], index: 0, kind: input, shape index: {}]
  %s1 = inlined_call_operand.vmem [shape: f32[1,64], index: 1, kind: input, shape index: {}]
  %s2 = inlined_call_operand.vmem [shape: f32[1,64], index: 2, kind: input, shape index: {}]
  %s3 = inlined_call_operand.vmem [shape: bf16[64,64], index: 3, kind: input, shape index: {}]
  %s4 = inlined_call_operand.vmem [shape: f32[1,64], index: 4, kind: input, shape index: {}]
  %s5 = inlined_call_operand.vmem [shape: bf16[16,64], index: 5, kind: output, shape index: {}]
  %s6 = sld [smem:[#allocation0]]
  $region30: #{esm2_forward.22} parent=0
    _
  %s8 = ssub.s32 1, %s6
  %s9 = scalar_select 0, %s8, %s6
  // Predicated region
  $region2: #{esm2_forward.22} parent=0 // pred_check
    _
  $region3: #{esm2_forward.22} parent=0 // pred_check_branch
    %11 = sbr.rel (0) target = $region5
  $region4: #{esm2_forward.22} parent=0 // pred_region
    _
  $region5: #{esm2_forward.22} parent=0 // pred_fallthru
    _
  // Predicated region
  $region6: #{esm2_forward.22} parent=0 // pred_check
    _
  $region7: #{esm2_forward.22} parent=0 // pred_check_branch
    %13 = sbr.rel (0) target = $region9
  $region8: #{esm2_forward.22} parent=0 // pred_region
    _
  $region9: #{esm2_forward.22} parent=0 // pred_fallthru
    _
  // Predicated region
  $region10: #{esm2_forward.22} parent=0 // pred_check
    _
  $region11: #{esm2_forward.22} parent=0 // pred_check_branch
    %15 = sbr.rel (0) target = $region13
  $region12: #{esm2_forward.22} parent=0 // pred_region
    _
  $region13: #{esm2_forward.22} parent=0 // pred_fallthru
    _
  // Predicated region
  $region14: #{esm2_forward.22} parent=0 // pred_check
    _
  $region15: #{esm2_forward.22} parent=0 // pred_check_branch
    %17 = sbr.rel (0) target = $region17
  $region16: #{esm2_forward.22} parent=0 // pred_region
    _
  $region17: #{esm2_forward.22} parent=0 // pred_fallthru
    _
  // Predicated region
  $region18: #{esm2_forward.22} parent=0 // pred_check
    _
  $region19: #{esm2_forward.22} parent=0 // pred_check_branch
    %19 = sbr.rel (0) target = $region21
  $region20: #{esm2_forward.22} parent=0 // pred_region
    _
  $region21: #{esm2_forward.22} parent=0 // pred_fallthru
    _
  %v21 = vld [vmem:[%s0] sm:$0xf]
  %v22 = vld [vmem:[%s0 + $0x4] sm:$0xf]
  %v23 = vunpack.c.l.bf16 %v21
  %v24 = vunpack.c.l.bf16 %v22
  %vm25 = vcmask 523264
  %v26 = vsel %vm25, %v23, 0.0
  %27 = vadd.xlane.f32.xlu0 %v26
  %v28 = vpop.xlane.xlu0 %27
  %v29 = vsel %vm25, %v24, 0.0
  %30 = vadd.xlane.f32.xlu0 %v29
  %v31 = vpop.xlane.xlu0 %30
  %v32 = vrcp.pop 64.0
  %v33 = vmul.f32 %v28, %v32
  %v34 = vmul.f32 %v31, %v32
  %v35 = vsub.f32 %v23, %v33
  %v36 = vsub.f32 %v24, %v34
  %v37 = vmul.f32 %v35, %v35
  %v38 = vmul.f32 %v36, %v36
  %v39 = vsel %vm25, %v37, 0.0
  %40 = vadd.xlane.f32.xlu0 %v39
  %v41 = vpop.xlane.xlu0 %40
  %v42 = vsel %vm25, %v38, 0.0
  %43 = vadd.xlane.f32.xlu0 %v42
  %v44 = vpop.xlane.xlu0 %43
  %v45 = vmul.f32 %v41, %v32
  %v46 = vmul.f32 %v44, %v32
  %v47 = vadd.f32 %v45, 1e-05
  %v48 = vadd.f32 %v46, 1e-05
  %v49 = vrsqrt.pop %v47
  %v50 = vrsqrt.pop %v48
  %v51 = vmul.f32 %v35, %v49
  %v52 = vmul.f32 %v36, %v50
  %v53 = vld [vmem:[%s1] sm:$0x1]
  %v55 = vlaneseq
  %v56 = vshrl.u32 %v55, 7
  %v57 = vsub.s32 0, %v56
  %v58 = vrot.slane %v53, %v57
  %v60 = vmul.f32 %v51, %v58
  %v61 = vmul.f32 %v52, %v58
  %v62 = vld [vmem:[%s2] sm:$0x1]
  %v64 = vlaneseq
  %v65 = vshrl.u32 %v64, 7
  %v66 = vsub.s32 0, %v65
  %v67 = vrot.slane %v62, %v66
  %v69 = vadd.f32 %v60, %v67
  %v70 = vadd.f32 %v61, %v67
  %v71 = vpack.c.bf16 %v70, %v69
  %v72 = vld [vmem:[%s3] sm:$0xf]
  %v73 = vld [vmem:[%s3 + $0x4] sm:$0xf]
  %v74 = vld [vmem:[%s3 + $0x8] sm:$0xf]
  %v75 = vld [vmem:[%s3 + $0xc] sm:$0xf]
  %v76 = vld [vmem:[%s3 + $0x10] sm:$0xf]
  %v77 = vld [vmem:[%s3 + $0x14] sm:$0xf]
  %v78 = vld [vmem:[%s3 + $0x18] sm:$0xf]
  %v79 = vld [vmem:[%s3 + $0x1c] sm:$0xf]
  %v80 = vld [vmem:[%s4] sm:$0x1]
  %v82 = vlaneseq
  %v83 = vshrl.u32 %v82, 7
  %v84 = vsub.s32 0, %v83
  %v85 = vrot.slane %v80, %v84
  %v95 = vunpack.c.l.b16 %v72
  %v96 = vunpack.c.l.b16 %v73
  %v97 = vunpack.c.l.b16 %v74
  %v98 = vunpack.c.l.b16 %v75
  %v99 = vunpack.c.l.b16 %v76
  %v100 = vunpack.c.l.b16 %v77
  %v101 = vunpack.c.l.b16 %v78
  %v102 = vunpack.c.l.b16 %v79
  %v103 = vpack.c.b16 %v96, %v95
  %v104 = vpack.c.b16 %v98, %v97
  %v105 = vpack.c.b16 %v100, %v99
  %v106 = vpack.c.b16 %v102, %v101
  %v112 = vsel %vm25, %v71, 0
  %114 = vmatprep.subr.bf16.mxu0 0
  %115 = vmatpush1.bf16.msra.mxu0 %v103
  %116 = vmatprep.subr.bf16.mxu0 0
  %117 = vmatpush1.bf16.msra.mxu0 %v104
  %118 = vmatprep.subr.bf16.mxu0 0
  %119 = vmatpush1.bf16.msra.mxu0 %v105
  %120 = vmatprep.subr.bf16.mxu0 0
  %121 = vmatpush1.bf16.msra.mxu0 %v106
  %122 = vmatprep.subr.bf16.mxu0 0
  %123 = vmatpush1.bf16.msra.mxu0 0
  %124 = vmatprep.subr.bf16.mxu0 0
  %125 = vmatpush1.bf16.msra.mxu0 0
  %126 = vmatprep.subr.bf16.mxu0 0
  %127 = vmatpush1.bf16.msra.mxu0 0
  %128 = vmatprep.subr.bf16.mxu0 0
  %129 = vmatpush1.bf16.msra.mxu0 0
  %130 = vmatprep.subr.bf16.mxu0 0
  %131 = vmatpush1.bf16.msra.mxu0 0
  %132 = vmatprep.subr.bf16.mxu0 0
  %133 = vmatpush1.bf16.msra.mxu0 0
  %134 = vmatprep.subr.bf16.mxu0 0
  %135 = vmatpush1.bf16.msra.mxu0 0
  %136 = vmatprep.subr.bf16.mxu0 0
  %137 = vmatpush1.bf16.msra.mxu0 0
  %138 = vmatprep.subr.bf16.mxu0 0
  %139 = vmatpush1.bf16.msra.mxu0 0
  %140 = vmatprep.subr.bf16.mxu0 0
  %141 = vmatpush1.bf16.msra.mxu0 0
  %142 = vmatprep.subr.bf16.mxu0 0
  %143 = vmatpush1.bf16.msra.mxu0 0
  %144 = vmatprep.subr.bf16.mxu0 0
  %145 = vmatpush1.bf16.msra.mxu0 0
  %146 = vmatprep.mubr.bf16.mxu0 0
  %147 = vmatmul.mubr.bf16.gmra.mrb[0].mxu0 %v112
  %v148 = vpop.f32.mrb[0].mxu0
  %v149 = vadd.f32 %v85, %v148
  %v150 = vpop.f32.mrb[0].mxu0
  %v151 = vpop.f32.mrb[0].mxu0
  %v152 = vadd.f32 %v85, %v151
  %v153 = vpop.f32.mrb[0].mxu0
  %154 = vdwg.mxu0
  %v155 = vmul.f32 %v149, 0.5
  %v156 = vmul.f32 %v152, 0.5
  %v157 = vmul.f32 %v149, 0.70710677
  %v158 = vmul.f32 %v152, 0.70710677
  %vm159 = vcmp.ge.f32.partialorder %v157, 0.0
  %vm160 = vcmp.ge.f32.partialorder %v158, 0.0
  %v161 = vsel %vm159, 1.0, -1.0
  %v162 = vsel %vm160, 1.0, -1.0
  %v163 = vand.u32 2147483647, %v157
  %v164 = vand.u32 2147483647, %v158
  %v165 = vmul.f32 %v163, 0.3275911
  %v166 = vmul.f32 %v164, 0.3275911
  %v167 = vadd.f32 %v165, 1.0
  %v168 = vadd.f32 %v166, 1.0
  %v169 = vrcp.pop %v167
  %v170 = vmul.f32 1.0, %v169
  %v171 = vrcp.pop %v168
  %v172 = vmul.f32 1.0, %v171
  %v173 = vmul.f32 %v170, 1.0614054
  %v174 = vmul.f32 %v172, 1.0614054
  %v175 = vadd.f32 %v173, -1.4531521
  %v176 = vadd.f32 %v174, -1.4531521
  %v177 = vmul.f32 %v175, %v170
  %v178 = vmul.f32 %v176, %v172
  %v179 = vadd.f32 %v177, 1.4214138
  %v180 = vadd.f32 %v178, 1.4214138
  %v181 = vmul.f32 %v179, %v170
  %v182 = vmul.f32 %v180, %v172
  %v183 = vadd.f32 %v181, -0.28449672
  %v184 = vadd.f32 %v182, -0.28449672
  %v185 = vmul.f32 %v183, %v170
  %v186 = vmul.f32 %v184, %v172
  %v187 = vadd.f32 %v185, 0.2548296
  %v188 = vadd.f32 %v186, 0.2548296
  %v189 = vmul.f32 %v187, %v170
  %v190 = vmul.f32 %v188, %v172
  %v191 = vsub.f32 0.0, %v163
  %v192 = vsub.f32 0.0, %v164
  %v193 = vmul.f32 %v191, %v163
  %v194 = vmul.f32 %v192, %v164
  %v195 = vmul.f32 %v193, 1.442695
  %v196 = vpow.pop %v195
  %v197 = vmul.f32 %v194, 1.442695
  %v198 = vpow.pop %v197
  %v199 = vmul.f32 %v189, %v196
  %v200 = vmul.f32 %v190, %v198
  %v201 = vsub.f32 1.0, %v199
  %v202 = vsub.f32 1.0, %v200
  %v203 = vmul.f32 %v161, %v201
  %v204 = vmul.f32 %v162, %v202
  %v205 = vadd.f32 %v203, 1.0
  %v206 = vadd.f32 %v204, 1.0
  %v207 = vmul.f32 %v155, %v205
  %v208 = vmul.f32 %v156, %v206
  %v209 = vpack.c.bf16 %v208, %v207
  %v211 = vunpack.c.l.b16 %v209
  %v212 = vunpack.c.h.b16 %v209
  %v213 = vpack.c.b16 %v211, %v211
  %v214 = vpack.c.b16 %v212, %v212
  %vm217 = vcmask 519168
  %218 = vst.msk [vmem:[%s5] sm:$0xf] %vm217, %v213
  %219 = vst.msk [vmem:[%s5 + $0x4] sm:$0xf] %vm217, %v214
  // Predicated region
  $region22: #{esm2_forward.22} parent=0 // pred_check
    _
  $region23: #{esm2_forward.22} parent=0 // pred_check_branch
    %221 = sbr.rel (0) target = $region25
  $region24: #{esm2_forward.22} parent=0 // pred_region
    _
  $region25: #{esm2_forward.22} parent=0 // pred_fallthru
    _
  // Predicated region
  $region26: #{esm2_forward.22} parent=0 // pred_check
    _
  $region27: #{esm2_forward.22} parent=0 // pred_check_branch
    %223 = sbr.rel (0) target = $region29
  $region28: #{esm2_forward.22} parent=0 // pred_region
    _
  $region29: #{esm2_forward.22} parent=0 // pred_fallthru
    _

// kernel: esm2_forward.23
$region0: #{esm2_forward.23}
  #allocation0 [shape = 'u32[]', space=smem, size = 0x4, offset = 0x4, fixed_abs, tag = 'smem constant byte address 0x4 - core index']
  #allocation1 [shape = 'u32[144,128]{1,0:T(1,128)}', space=vmem, size = 0x12000, scoped, tag = 'internal scratch']
  %s0 = inlined_call_operand.vmem [shape: bf16[16,64], index: 0, kind: input, shape index: {}]
  %s1 = inlined_call_operand.vmem [shape: f32[1,64], index: 1, kind: input, shape index: {}]
  %s2 = inlined_call_operand.vmem [shape: f32[1,64], index: 2, kind: input, shape index: {}]
  %s3 = inlined_call_operand.vmem [shape: bf16[64,128], index: 3, kind: input, shape index: {}]
  %s4 = inlined_call_operand.vmem [shape: f32[1,128], index: 4, kind: input, shape index: {}]
  %s5 = inlined_call_operand.vmem [shape: f32[16,128], index: 5, kind: output, shape index: {}]
  %s6 = sld [smem:[#allocation0]]
  $region30: #{esm2_forward.23} parent=0
    _
  %s8 = ssub.s32 1, %s6
  %s9 = scalar_select 0, %s8, %s6
  // Predicated region
  $region2: #{esm2_forward.23} parent=0 // pred_check
    _
  $region3: #{esm2_forward.23} parent=0 // pred_check_branch
    %11 = sbr.rel (0) target = $region5
  $region4: #{esm2_forward.23} parent=0 // pred_region
    _
  $region5: #{esm2_forward.23} parent=0 // pred_fallthru
    _
  // Predicated region
  $region6: #{esm2_forward.23} parent=0 // pred_check
    _
  $region7: #{esm2_forward.23} parent=0 // pred_check_branch
    %13 = sbr.rel (0) target = $region9
  $region8: #{esm2_forward.23} parent=0 // pred_region
    _
  $region9: #{esm2_forward.23} parent=0 // pred_fallthru
    _
  // Predicated region
  $region10: #{esm2_forward.23} parent=0 // pred_check
    _
  $region11: #{esm2_forward.23} parent=0 // pred_check_branch
    %15 = sbr.rel (0) target = $region13
  $region12: #{esm2_forward.23} parent=0 // pred_region
    _
  $region13: #{esm2_forward.23} parent=0 // pred_fallthru
    _
  // Predicated region
  $region14: #{esm2_forward.23} parent=0 // pred_check
    _
  $region15: #{esm2_forward.23} parent=0 // pred_check_branch
    %17 = sbr.rel (0) target = $region17
  $region16: #{esm2_forward.23} parent=0 // pred_region
    _
  $region17: #{esm2_forward.23} parent=0 // pred_fallthru
    _
  // Predicated region
  $region18: #{esm2_forward.23} parent=0 // pred_check
    _
  $region19: #{esm2_forward.23} parent=0 // pred_check_branch
    %19 = sbr.rel (0) target = $region21
  $region20: #{esm2_forward.23} parent=0 // pred_region
    _
  $region21: #{esm2_forward.23} parent=0 // pred_fallthru
    _
  %v21 = vld [vmem:[%s0] sm:$0xf]
  %v22 = vld [vmem:[%s0 + $0x4] sm:$0xf]
  %v23 = vunpack.c.l.bf16 %v21
  %v24 = vunpack.c.l.bf16 %v22
  %vm25 = vcmask 523264
  %v26 = vsel %vm25, %v23, 0.0
  %27 = vadd.xlane.f32.xlu0 %v26
  %v28 = vpop.xlane.xlu0 %27
  %v29 = vsel %vm25, %v24, 0.0
  %30 = vadd.xlane.f32.xlu0 %v29
  %v31 = vpop.xlane.xlu0 %30
  %v32 = vrcp.pop 64.0
  %v33 = vmul.f32 %v28, %v32
  %v34 = vmul.f32 %v31, %v32
  %v35 = vsub.f32 %v23, %v33
  %v36 = vsub.f32 %v24, %v34
  %v37 = vmul.f32 %v35, %v35
  %v38 = vmul.f32 %v36, %v36
  %v39 = vsel %vm25, %v37, 0.0
  %40 = vadd.xlane.f32.xlu0 %v39
  %v41 = vpop.xlane.xlu0 %40
  %v42 = vsel %vm25, %v38, 0.0
  %43 = vadd.xlane.f32.xlu0 %v42
  %v44 = vpop.xlane.xlu0 %43
  %v45 = vmul.f32 %v41, %v32
  %v46 = vmul.f32 %v44, %v32
  %v47 = vadd.f32 %v45, 1e-05
  %v48 = vadd.f32 %v46, 1e-05
  %v49 = vrsqrt.pop %v47
  %v50 = vrsqrt.pop %v48
  %v51 = vmul.f32 %v35, %v49
  %v52 = vmul.f32 %v36, %v50
  %v53 = vld [vmem:[%s1] sm:$0x1]
  %v55 = vlaneseq
  %v56 = vshrl.u32 %v55, 7
  %v57 = vsub.s32 0, %v56
  %v58 = vrot.slane %v53, %v57
  %v60 = vmul.f32 %v51, %v58
  %v61 = vmul.f32 %v52, %v58
  %v62 = vld [vmem:[%s2] sm:$0x1]
  %v64 = vlaneseq
  %v65 = vshrl.u32 %v64, 7
  %v66 = vsub.s32 0, %v65
  %v67 = vrot.slane %v62, %v66
  %v69 = vadd.f32 %v60, %v67
  %v70 = vadd.f32 %v61, %v67
  %v71 = vpack.c.bf16 %v70, %v69
  %v72 = vld [vmem:[%s3] sm:$0xf]
  %v73 = vld [vmem:[%s3 + $0x4] sm:$0xf]
  %v74 = vld [vmem:[%s3 + $0x8] sm:$0xf]
  %v75 = vld [vmem:[%s3 + $0xc] sm:$0xf]
  %v76 = vld [vmem:[%s3 + $0x10] sm:$0xf]
  %v77 = vld [vmem:[%s3 + $0x14] sm:$0xf]
  %v78 = vld [vmem:[%s3 + $0x18] sm:$0xf]
  %v79 = vld [vmem:[%s3 + $0x1c] sm:$0xf]
  %v80 = vld [vmem:[%s4] sm:$0x1]
  %v82 = vlaneseq
  %v83 = vshrl.u32 %v82, 7
  %v84 = vsub.s32 0, %v83
  %v85 = vrot.slane %v80, %v84
  %v95 = vunpack.c.l.b16 %v72
  %v96 = vunpack.c.l.b16 %v73
  %v97 = vunpack.c.l.b16 %v74
  %v98 = vunpack.c.l.b16 %v75
  %v99 = vunpack.c.l.b16 %v76
  %v100 = vunpack.c.l.b16 %v77
  %v101 = vunpack.c.l.b16 %v78
  %v102 = vunpack.c.l.b16 %v79
  %v103 = vpack.c.b16 %v96, %v95
  %v104 = vpack.c.b16 %v98, %v97
  %v105 = vpack.c.b16 %v100, %v99
  %v106 = vpack.c.b16 %v102, %v101
  %v112 = vsel %vm25, %v71, 0
  %114 = vmatprep.subr.bf16.mxu0 0
  %115 = vmatpush1.bf16.msra.mxu0 %v103
  %116 = vmatprep.subr.bf16.mxu0 0
  %117 = vmatpush1.bf16.msra.mxu0 %v104
  %118 = vmatprep.subr.bf16.mxu0 0
  %119 = vmatpush1.bf16.msra.mxu0 %v105
  %120 = vmatprep.subr.bf16.mxu0 0
  %121 = vmatpush1.bf16.msra.mxu0 %v106
  %122 = vmatprep.subr.bf16.mxu0 0
  %123 = vmatpush1.bf16.msra.mxu0 0
  %124 = vmatprep.subr.bf16.mxu0 0
  %125 = vmatpush1.bf16.msra.mxu0 0
  %126 = vmatprep.subr.bf16.mxu0 0
  %127 = vmatpush1.bf16.msra.mxu0 0
  %128 = vmatprep.subr.bf16.mxu0 0
  %129 = vmatpush1.bf16.msra.mxu0 0
  %130 = vmatprep.subr.bf16.mxu0 0
  %131 = vmatpush1.bf16.msra.mxu0 0
  %132 = vmatprep.subr.bf16.mxu0 0
  %133 = vmatpush1.bf16.msra.mxu0 0
  %134 = vmatprep.subr.bf16.mxu0 0
  %135 = vmatpush1.bf16.msra.mxu0 0
  %136 = vmatprep.subr.bf16.mxu0 0
  %137 = vmatpush1.bf16.msra.mxu0 0
  %138 = vmatprep.subr.bf16.mxu0 0
  %139 = vmatpush1.bf16.msra.mxu0 0
  %140 = vmatprep.subr.bf16.mxu0 0
  %141 = vmatpush1.bf16.msra.mxu0 0
  %142 = vmatprep.subr.bf16.mxu0 0
  %143 = vmatpush1.bf16.msra.mxu0 0
  %144 = vmatprep.subr.bf16.mxu0 0
  %145 = vmatpush1.bf16.msra.mxu0 0
  %146 = vmatprep.mubr.bf16.mxu0 0
  %147 = vmatmul.mubr.bf16.gmra.mrb[0].mxu0 %v112
  %v148 = vpop.f32.mrb[0].mxu0
  %v149 = vadd.f32 %v85, %v148
  %v150 = vpop.f32.mrb[0].mxu0
  %v151 = vpop.f32.mrb[0].mxu0
  %v152 = vadd.f32 %v85, %v151
  %v153 = vpop.f32.mrb[0].mxu0
  %154 = vdwg.mxu0
  %155 = vst [vmem:[%s5] sm:$0xff] %v149
  %156 = vst [vmem:[%s5 + $0x8] sm:$0xff] %v152
  // Predicated region
  $region22: #{esm2_forward.23} parent=0 // pred_check
    _
  $region23: #{esm2_forward.23} parent=0 // pred_check_branch
    %158 = sbr.rel (0) target = $region25
  $region24: #{esm2_forward.23} parent=0 // pred_region
    _
  $region25: #{esm2_forward.23} parent=0 // pred_fallthru
    _
  // Predicated region
  $region26: #{esm2_forward.23} parent=0 // pred_check
    _
  $region27: #{esm2_forward.23} parent=0 // pred_check_branch
    %160 = sbr.rel (0) target = $region29
  $region28: #{esm2_forward.23} parent=0 // pred_region
    _
  $region29: #{esm2_forward.23} parent=0 // pred_fallthru
    _

</llo_original>
